<compile_context>
chip_gen: v5e
topology: v5e:2x2
jax: 0.10.0
libtpu: 0.0.40
codegen_flags: <defaults>
</compile_context>

<pallas_src>
import math
import numpy as np
import jax
import jax.numpy as jnp
from jax.experimental import pallas as pl
from jax.experimental.pallas import tpu as pltpu

# ---------------- small demo configuration (consistent with the module) -------------
SPACE_SIZE = 16
PATCH_SIZE = 4           # patch_size ** 3 = 64
PATCH_NUM = 8            # L
IN_CHANS = 3
EMBED_DIM = 32
DEPTH = 2
NUM_HEADS = 4
DEC_EMBED_DIM = 32
DEC_DEPTH = 1
DEC_NUM_HEADS = 4
MLP_RATIO = 4.0
MASK_RATIO = 0.75
BATCH = 2
NUM_POINTS = 40
PS3 = PATCH_SIZE ** 3
LN_EPS = 1e-5
NEG_MASK = -1e9          # additive mask for cross-batch entries (exp underflows to 0)

assert SPACE_SIZE % PATCH_SIZE == 0

# MXU operand dtype. Keep f32 to match the reference numerics on all generations;
# set to jnp.bfloat16 on v6e/v7x to cut MXU passes ~3x (accumulation stays f32,
# elementwise math stays f32 which v5e requires anyway).
MXU_IN_DTYPE = jnp.float32


def _mm(a, b):
    """Plain matmul with f32 accumulate (operands optionally cast for the MXU)."""
    return jnp.dot(a.astype(MXU_IN_DTYPE), b.astype(MXU_IN_DTYPE),
                   preferred_element_type=jnp.float32)


def _mm_nt(a, b):
    """a @ b.T without materializing the transpose (contract last dims of both)."""
    return jax.lax.dot_general(a.astype(MXU_IN_DTYPE), b.astype(MXU_IN_DTYPE),
                               (((1,), (1,)), ((), ())),
                               preferred_element_type=jnp.float32)


# TODO(synk): PyTorch nn.GELU uses the exact erf formulation; tanh approximation used
# here for portable Mosaic lowering (numerically ~1e-3 apart).
def _gelu(x):
    c = math.sqrt(2.0 / math.pi)
    return 0.5 * x * (1.0 + jnp.tanh(c * (x + 0.044715 * x * x * x)))


def _ln(v, w, b):
    """LayerNorm over the last axis; w/b are [1, C] (broadcast against [R, C])."""
    mu = jnp.mean(v, axis=-1, keepdims=True)
    var = jnp.mean(jnp.square(v - mu), axis=-1, keepdims=True)
    return (v - mu) * jax.lax.rsqrt(var + LN_EPS) * w + b


def _round_up(x, m):
    return ((x + m - 1) // m) * m


# ------------------------------- Pallas kernels -------------------------------------
def transformer_stack_pallas(x2d, mask_big, head_mask, w_blob, b_blob, out_w, tail,
                             *, num_heads):
    """Fused: [depth x Block] -> LayerNorm -> single output projection.

    x2d:       [B*N, C]         batch-flattened residual stream
    mask_big:  [B*N, H*B*N]     additive mask (batch block-diag + padding + cls),
                                tiled once per head along the lane axis
    head_mask: [H*B*N, C]       constant 0/1 mask: row-block h <-> lane group h
    w_blob:    [depth, C, 12C]  qkv_w | proj_w | fc1_w | fc2_w^T  (packed, 1 DMA)
    b_blob:    [depth, 1, 13C]  ln1_w|ln1_b|qkv_b|proj_b|ln2_w|ln2_b|fc1_b|fc2_b
    out_w:     [C, Co]          decoder_embed (encoder) or padded pred|occu head (decoder)
    tail:      [1, 2C + Co]     final-LN weight | bias | output bias
    """
    BN, C = x2d.shape
    H = num_heads
    hd = C // H
    depth = w_blob.shape[0]
    Co = out_w.shape[1]
    scale = hd ** (-0.5)

    def kernel(x_ref, m_ref, hm_ref, w_ref, b_ref, ow_ref, tl_ref, o_ref):
        x = x_ref[...]                    # [BN, C] stays resident for the whole stack
        mask = m_ref[...]                 # [BN, H*BN]
        hmask = hm_ref[...]               # [H*BN, C]

        for l in range(depth):            # static unroll over layers
            # per-layer weight/bias views (static slices of the packed blobs)
            qkv_w = w_ref[l, :, 0:3 * C]
            proj_w = w_ref[l, :, 3 * C:4 * C]
            fc1_w = w_ref[l, :, 4 * C:8 * C]
            fc2_wt = w_ref[l, :, 8 * C:12 * C]          # fc2 weight stored transposed
            ln1_w = b_ref[l, :, 0:C]
            ln1_b = b_ref[l, :, C:2 * C]
            qkv_b = b_ref[l, :, 2 * C:5 * C]
            proj_b = b_ref[l, :, 5 * C:6 * C]
            ln2_w = b_ref[l, :, 6 * C:7 * C]
            ln2_b = b_ref[l, :, 7 * C:8 * C]
            fc1_b = b_ref[l, :, 8 * C:12 * C]
            fc2_b = b_ref[l, :, 12 * C:13 * C]

            # ---- block-diagonal multi-head attention (batch + heads fused) ----
            y = _ln(x, ln1_w, ln1_b)
            qkv = _mm(y, qkv_w) + qkv_b                 # [BN, 3C]
            q = qkv[:, 0:C]
            # stack k/v head-major on sublanes; lane groups outside a row's head are zero
            k_stack = jnp.concatenate([qkv[:, C:2 * C]] * H, axis=0) * hmask      # [H*BN, C]
            v_stack = jnp.concatenate([qkv[:, 2 * C:3 * C]] * H, axis=0) * hmask  # [H*BN, C]

            s = _mm_nt(q, k_stack) * scale + mask       # [BN, H*BN], one score matmul
            # joint row max is a valid per-head stabilizer; sums below are per head
            p = jnp.exp(s - jnp.max(s, axis=-1, keepdims=True))
            num = _mm(p, v_stack)                       # [BN, C] all heads at once
            den = _mm(p, hmask)                         # per-head softmax sums, broadcast
            attn = num * pl.reciprocal(den, approx=True)
            x = x + _mm(attn, proj_w) + proj_b

            # ---- MLP ----
            y2 = _ln(x, ln2_w, ln2_b)
            h1 = _gelu(_mm(y2, fc1_w) + fc1_b)          # [BN, 4C]
            x = x + _mm_nt(h1, fc2_wt) + fc2_b

        # final LayerNorm + fused output projection, single lane-dense slab store
        tl = tl_ref[...]
        nw = tl[:, 0:C]
        nb = tl[:, C:2 * C]
        ob = tl[:, 2 * C:2 * C + Co]
        o_ref[...] = _mm(_ln(x, nw, nb), ow_ref[...]) + ob

    # TODO(synk): on v7x a ("parallel",) grid split over the B*N rows would engage the
    # second TensorCore; at demo size the per-step grid overhead is break-even so the
    # gridless whole-stack-resident form is kept.
    return pl.pallas_call(
        kernel,
        out_shape=jax.ShapeDtypeStruct((BN, Co), jnp.float32),
        compiler_params=pltpu.CompilerParams(vmem_limit_bytes=32 * 1024 * 1024),
    )(x2d, mask_big, head_mask, w_blob, b_blob, out_w, tail)


def pos_mlps_pallas(coords, params):
    """Both positional MLPs (enc + dec) fused: lane-concat layer 1, block-diag layer 2."""
    B, L, Ci = coords.shape
    E, Dd = EMBED_DIM, DEC_EMBED_DIM
    c2 = coords.reshape(B * L, Ci)

    def kernel(c_ref, w1_ref, b1_ref, w2_ref, b2_ref, o_ref):
        h = _gelu(_mm(c_ref[...], w1_ref[...]) + b1_ref[...])
        o_ref[...] = _mm(h, w2_ref[...]) + b2_ref[...]

    out = pl.pallas_call(
        kernel,
        out_shape=jax.ShapeDtypeStruct((B * L, E + Dd), jnp.float32),
        compiler_params=pltpu.CompilerParams(vmem_limit_bytes=32 * 1024 * 1024),
    )(c2, params['pos_w1'], params['pos_b1'], params['pos_w2'], params['pos_b2'])
    return out[:, :E].reshape(B, L, E), out[:, E:].reshape(B, L, Dd)


# ------------------------------- mask / layout helpers -------------------------------
def _pad_cls_mask(m):
    """[B, L, L] -> [B, L+1, L+1] with zero cls row/column (reference semantics)."""
    B, L, _ = m.shape
    m = jnp.concatenate([jnp.zeros((B, 1, L), m.dtype), m], axis=1)
    return jnp.concatenate([jnp.zeros((B, L + 1, 1), m.dtype), m], axis=2)


def _build_big_mask(amm, num_heads):
    """[B, N, N] additive mask -> [B*N, H*B*N] batch-block-diagonal mask tiled per head."""
    B, N, _ = amm.shape
    eye = jnp.eye(B, dtype=bool)
    big = jnp.where(eye[:, None, :, None], amm[:, :, None, :], NEG_MASK)   # [B,N,B,N]
    big = big.reshape(B * N, B * N)
    return jnp.tile(big, (1, num_heads))                                   # [BN, H*BN]


def _build_head_mask(bn, c, num_heads):
    """Constant [H*BN, C] 0/1 mask: row-block h keeps only the lanes of head h."""
    hd = c // num_heads
    rows = np.arange(num_heads * bn) // bn
    cols = np.arange(c) // hd
    return jnp.asarray((rows[:, None] == cols[None, :]).astype(np.float32))


# ------------------------------- parameter init -------------------------------------
def _pack_blocks(blocks):
    """Pack per-block weights into one [D, C, 12C] blob and one [D, 1, 13C] blob."""
    w_rows, b_rows = [], []
    for blk in blocks:
        w_rows.append(jnp.concatenate(
            [blk['qkv_w'], blk['proj_w'], blk['fc1_w'], blk['fc2_w'].T], axis=1))
        b_rows.append(jnp.concatenate(
            [blk['ln1_w'], blk['ln1_b'], blk['qkv_b'], blk['proj_b'],
             blk['ln2_w'], blk['ln2_b'], blk['fc1_b'], blk['fc2_b']])[None, :])
    return jnp.stack(w_rows, axis=0), jnp.stack(b_rows, axis=0)


def init_params(key):
    E, Dd = EMBED_DIM, DEC_EMBED_DIM
    kit = iter(jax.random.split(key, 64))

    def xav(shape, fan_in, fan_out):
        lim = math.sqrt(6.0 / (fan_in + fan_out))
        return jax.random.uniform(next(kit), shape, jnp.float32, -lim, lim)

    def linear(din, dout):
        return {'w': xav((din, dout), din, dout), 'b': jnp.zeros((dout,), jnp.float32)}

    def block(dim):
        hdim = int(dim * MLP_RATIO)
        return {
            'ln1_w': jnp.ones((dim,), jnp.float32), 'ln1_b': jnp.zeros((dim,), jnp.float32),
            'qkv_w': xav((dim, 3 * dim), dim, 3 * dim), 'qkv_b': jnp.zeros((3 * dim,), jnp.float32),
            'proj_w': xav((dim, dim), dim, dim), 'proj_b': jnp.zeros((dim,), jnp.float32),
            'ln2_w': jnp.ones((dim,), jnp.float32), 'ln2_b': jnp.zeros((dim,), jnp.float32),
            'fc1_w': xav((dim, hdim), dim, hdim), 'fc1_b': jnp.zeros((hdim,), jnp.float32),
            'fc2_w': xav((hdim, dim), hdim, dim), 'fc2_b': jnp.zeros((dim,), jnp.float32),
        }

    pe1, pe2 = linear(3, E), linear(E, E)
    pd1, pd2 = linear(3, Dd), linear(Dd, Dd)
    blocks = [block(E) for _ in range(DEPTH)]
    dec_blocks = [block(Dd) for _ in range(DEC_DEPTH)]
    norm_w, norm_b = jnp.ones((E,), jnp.float32), jnp.zeros((E,), jnp.float32)
    dec_norm_w, dec_norm_b = jnp.ones((Dd,), jnp.float32), jnp.zeros((Dd,), jnp.float32)
    dec_embed = linear(E, Dd)
    dec_pred = linear(Dd, PS3 * IN_CHANS)
    occ_pred = linear(Dd, PS3 * 2)

    enc_w, enc_b = _pack_blocks(blocks)
    dec_w, dec_b = _pack_blocks(dec_blocks)

    # fused + lane-padded prediction head (decoder_pred | occupancy_pred | zero pad)
    co_pad = _round_up(PS3 * IN_CHANS + PS3 * 2, 128)          # 320 -> 384
    heads_w = jnp.concatenate([dec_pred['w'], occ_pred['w']], axis=1)
    heads_b = jnp.concatenate([dec_pred['b'], occ_pred['b']])
    heads_w_pad = jnp.pad(heads_w, ((0, 0), (0, co_pad - heads_w.shape[1])))
    heads_b_pad = jnp.pad(heads_b, (0, co_pad - heads_b.shape[0]))

    params = {
        'proj_weights': xav((PS3, IN_CHANS, E), IN_CHANS * E, PS3),
        'cls_token': 0.02 * jax.random.normal(next(kit), (1, 1, E), jnp.float32),
        'mask_token': 0.02 * jax.random.normal(next(kit), (1, 1, Dd), jnp.float32),
        # fused positional MLPs: lane-concat first layer, block-diagonal second layer
        'pos_w1': jnp.concatenate([pe1['w'], pd1['w']], axis=1),
        'pos_b1': jnp.concatenate([pe1['b'], pd1['b']])[None, :],
        'pos_w2': jnp.zeros((E + Dd, E + Dd), jnp.float32)
                    .at[:E, :E].set(pe2['w']).at[E:, E:].set(pd2['w']),
        'pos_b2': jnp.concatenate([pe2['b'], pd2['b']])[None, :],
        # encoder stack: packed blobs + (final LN | decoder_embed) output projection
        'enc_w_blob': enc_w, 'enc_b_blob': enc_b,
        'enc_out_w': dec_embed['w'],
        'enc_tail': jnp.concatenate([norm_w, norm_b, dec_embed['b']])[None, :],
        # decoder stack: packed blobs + (dec LN | fused padded prediction head)
        'dec_w_blob': dec_w, 'dec_b_blob': dec_b,
        'dec_out_w': heads_w_pad,
        'dec_tail': jnp.concatenate([dec_norm_w, dec_norm_b, heads_b_pad])[None, :],
    }
    return params


# ------------------------------- model forward --------------------------------------
def patch_embed_forward(params, info, pad_positions):
    sel_features = info['sel_features']             # [P, in_chans]
    coords_rela_query = info['coords_rela_query']   # [P] voxel index within patch
    patch_unq_inv = info['patch_unq_inv']           # [P] -> unique occupied patch id
    coords_abs_cut = info['coords_abs_cut']          # [B*patch_num, 3]
    M = pad_positions.shape[0]                       # number of occupied patches

    # per-point bmm: (1, in_chans) @ proj_weights[voxel]  (gather-dominated; JAX glue)
    gathered = params['proj_weights'][coords_rela_query]          # [P, in_chans, E]
    features = jnp.einsum('pc,pce->pe', sel_features, gathered)   # [P, E]

    # scatter(..., reduce='mean') over points of each occupied patch
    sums = jax.ops.segment_sum(features, patch_unq_inv, num_segments=M)
    cnts = jax.ops.segment_sum(jnp.ones((features.shape[0], 1), jnp.float32),
                               patch_unq_inv, num_segments=M)
    features = sums / jnp.maximum(cnts, 1.0)

    E = features.shape[1]
    features_patch = jnp.zeros((BATCH * PATCH_NUM, E), jnp.float32)
    features_patch = features_patch.at[pad_positions].set(features)   # pad_mask placement
    features_patch = features_patch.reshape(BATCH, PATCH_NUM, E)

    coords = coords_abs_cut.reshape(BATCH, PATCH_NUM, 3)
    pos_emb_enc, pos_emb_dec = pos_mlps_pallas(coords, params)
    return features_patch + pos_emb_enc, sel_features, info['sel_coors'], pos_emb_dec


def random_masking(x, attn_mask, key):
    N, L, D = x.shape
    len_keep = int(L * (1 - MASK_RATIO))
    noise = jax.random.uniform(key, (N, L))
    ids_shuffle = jnp.argsort(noise, axis=1)
    ids_restore = jnp.argsort(ids_shuffle, axis=1)
    ids_keep = ids_shuffle[:, :len_keep]
    am = jnp.take_along_axis(attn_mask, ids_keep[:, :, None], axis=1)
    am = jnp.take_along_axis(am, ids_keep[:, None, :], axis=2)
    x_masked = jnp.take_along_axis(x, ids_keep[:, :, None], axis=1)
    mask = jnp.ones((N, L), jnp.float32).at[:, :len_keep].set(0.0)
    mask = jnp.take_along_axis(mask, ids_restore, axis=1)
    return x_masked, mask, ids_restore, am


def forward_encoder(params, samples, pad_positions, mask_key):
    attn_mask = samples['attn_mask']
    x, sel_features, sel_coors, pos_emb_dec = patch_embed_forward(params, samples, pad_positions)
    x, mask, ids_restore, amm = random_masking(x, attn_mask, mask_key)
    B, L, C = x.shape
    N = L + 1
    cls = jnp.broadcast_to(params['cls_token'], (B, 1, C))
    x = jnp.concatenate([cls, x], axis=1)                         # [B, N, C]
    amm = _pad_cls_mask(amm)                                      # [B, N, N]
    mask_big = _build_big_mask(amm, NUM_HEADS)                    # [B*N, H*B*N]
    head_mask = _build_head_mask(B * N, C, NUM_HEADS)
    # fused: DEPTH encoder blocks + final LayerNorm + decoder_embed, ONE pallas_call
    out2 = transformer_stack_pallas(
        x.reshape(B * N, C), mask_big, head_mask,
        params['enc_w_blob'], params['enc_b_blob'],
        params['enc_out_w'], params['enc_tail'], num_heads=NUM_HEADS)
    x_dec = out2.reshape(B, N, DEC_EMBED_DIM)
    return x_dec, mask, ids_restore, sel_features, sel_coors, pos_emb_dec


def forward_decoder(params, x, ids_restore, pos_emb_dec, attn_mask):
    # x has already been decoder_embed-ed inside the fused encoder kernel.
    B, _, Dd = x.shape
    L = ids_restore.shape[1]
    n_mask = L + 1 - x.shape[1]
    mask_tokens = jnp.broadcast_to(params['mask_token'], (B, n_mask, Dd))
    x_ = jnp.concatenate([x[:, 1:, :], mask_tokens], axis=1)
    x_ = jnp.take_along_axis(x_, ids_restore[:, :, None], axis=1)
    x_ = x_ + pos_emb_dec
    x = jnp.concatenate([x[:, :1, :], x_], axis=1)                # [B, L+1, Dd]
    N = L + 1
    am = _pad_cls_mask(attn_mask)
    mask_big = _build_big_mask(am, DEC_NUM_HEADS)
    head_mask = _build_head_mask(B * N, Dd, DEC_NUM_HEADS)
    # fused: dec blocks + dec_norm + (decoder_pred | occupancy_pred), ONE pallas_call
    out2 = transformer_stack_pallas(
        x.reshape(B * N, Dd), mask_big, head_mask,
        params['dec_w_blob'], params['dec_b_blob'],
        params['dec_out_w'], params['dec_tail'], num_heads=DEC_NUM_HEADS)
    out = out2.reshape(B, N, -1)
    n_pred = PS3 * IN_CHANS
    pred = out[:, 1:, :n_pred]
    occu = out[:, 1:, n_pred:n_pred + PS3 * 2]
    return pred, occu


def forward_loss(sel_features, sel_coors, pred, mask, occu):
    N, L, C = pred.shape
    ic = IN_CHANS
    ps3 = PS3

    patch_indicator = sel_coors[:, 0] * L + sel_coors[:, 1]
    mask_flat = mask.reshape(-1)
    point_mask = mask_flat[patch_indicator]
    sel = point_mask > 0.5                     # points in masked (reconstructed) patches

    # flat index into (N, L, ps^3) == n*(L*ps3) + l*ps3 + voxel
    tq = sel_coors[:, -1] + sel_coors[:, -2] * ps3 + sel_coors[:, -3] * (ps3 * L)

    pred_flat = pred.reshape(N * L * ps3, ic)  # == reshape(N, L, ps3, ic).reshape(-1, ic)
    pred_sel = pred_flat[tq]

    # occupancy ground-truth scatter (unselected points dropped via OOB index)
    gt_idx = jnp.where(sel, tq, N * L * ps3)
    occu_gt = jnp.zeros((N * L * ps3,), jnp.int32).at[gt_idx].set(1, mode='drop')

    # mse_loss: (pred - sel_features)^2 scatter-mean over batch index of selected points
    w = sel.astype(jnp.float32)[:, None]
    err = jnp.square(pred_sel - sel_features) * w
    seg = sel_coors[:, 0]
    sums = jax.ops.segment_sum(err, seg, num_segments=N)
    cnts = jax.ops.segment_sum(w, seg, num_segments=N)
    loss_mse = sums / jnp.maximum(cnts, 1.0)

    # CrossEntropyLoss over occupancy logits (class dim last before permute)
    logits = occu.reshape(N * L * ps3, 2)
    logz = jax.scipy.special.logsumexp(logits, axis=-1)
    picked = jnp.take_along_axis(logits, occu_gt[:, None], axis=-1)[:, 0]
    occu_loss = jnp.mean(logz - picked)

    return loss_mse.sum() / mask.sum() + occu_loss


@jax.jit
def mae_forward(params, samples, pad_positions, mask_key):
    latent, mask, ids_restore, sel_features, sel_coors, pos_emb_dec = forward_encoder(
        params, samples, pad_positions, mask_key)
    pred, occu = forward_decoder(params, latent, ids_restore, pos_emb_dec, samples['attn_mask'])
    return forward_loss(sel_features, sel_coors, pred, mask, occu)


# ------------------------------------ main -------------------------------------------
if __name__ == "__main__":
    key = jax.random.PRNGKey(0)
    kparam, kdata, kmask = jax.random.split(key, 3)
    params = init_params(kparam)

    kd = jax.random.split(kdata, 6)
    pt_batch = jax.random.randint(kd[0], (NUM_POINTS,), 0, BATCH)
    pt_patch = jax.random.randint(kd[1], (NUM_POINTS,), 0, PATCH_NUM)
    voxel = jax.random.randint(kd[2], (NUM_POINTS,), 0, PS3)
    sel_features = jax.random.normal(kd[3], (NUM_POINTS, IN_CHANS), jnp.float32)
    coords_abs_cut = jax.random.uniform(kd[4], (BATCH * PATCH_NUM, 3), jnp.float32)

    # build the sparse bookkeeping (pad_mask / patch_unq_inv) consistently on host
    pt_batch_np = np.asarray(pt_batch)
    pt_patch_np = np.asarray(pt_patch)
    flat = pt_batch_np * PATCH_NUM + pt_patch_np
    unique_flat = np.unique(flat)                              # ascending -> pad_mask order
    patch_unq_inv = np.searchsorted(unique_flat, flat).astype(np.int32)
    pad_positions = jnp.asarray(unique_flat.astype(np.int32))  # indices where pad_mask is True
    valid = np.zeros((BATCH * PATCH_NUM,), dtype=bool)
    valid[unique_flat] = True
    valid = valid.reshape(BATCH, PATCH_NUM)
    attn_mask = np.broadcast_to(
        np.where(valid[:, None, :], 0.0, -1e4).astype(np.float32),
        (BATCH, PATCH_NUM, PATCH_NUM)).copy()

    sel_coors = jnp.stack([pt_batch, pt_patch, voxel], axis=1).astype(jnp.int32)

    samples = {
        'sel_features': sel_features,
        'coords_rela_query': voxel.astype(jnp.int32),
        'patch_unq_inv': jnp.asarray(patch_unq_inv),
        'coords_abs_cut': coords_abs_cut,
        'sel_coors': sel_coors,
        'attn_mask': jnp.asarray(attn_mask),
    }

    loss = mae_forward(params, samples, pad_positions, kmask)
    loss = jax.block_until_ready(loss)
    assert bool(jnp.isfinite(loss)), f"non-finite loss: {loss}"
    print("KERNEL_OK")
</pallas_src>

<mosaic_0001>
module attributes {stable_mosaic.version = 11 : i64} {
  func.func @kernel(%arg0: memref<16x3xf32, #tpu.memory_space<vmem>>, %arg1: memref<3x64xf32, #tpu.memory_space<vmem>>, %arg2: memref<1x64xf32, #tpu.memory_space<vmem>>, %arg3: memref<64x64xf32, #tpu.memory_space<vmem>>, %arg4: memref<1x64xf32, #tpu.memory_space<vmem>>, %arg5: memref<16x64xf32, #tpu.memory_space<vmem>>) attributes {dimension_semantics = [], scalar_prefetch = 0 : i64, scratch_operands = 0 : i64, tpu.core_type = #tpu.core_type<tc>} {
    %c0 = arith.constant 0 : index
    %c0_0 = arith.constant 0 : index
    %0 = vector.load %arg0[%c0, %c0_0] : memref<16x3xf32, #tpu.memory_space<vmem>>, vector<16x3xf32>
    %c0_1 = arith.constant 0 : index
    %c0_2 = arith.constant 0 : index
    %1 = vector.load %arg1[%c0_1, %c0_2] : memref<3x64xf32, #tpu.memory_space<vmem>>, vector<3x64xf32>
    %cst = arith.constant dense<0.000000e+00> : vector<16x64xf32>
    %2 = tpu.matmul %0, %1, %cst {dimension_numbers = #tpu.dot_dimension_numbers<[1], [0], [0], [1], [0, 0, 1, 1], [], []>} : vector<16x3xf32>, vector<3x64xf32>, vector<16x64xf32> -> vector<16x64xf32>
    %c0_3 = arith.constant 0 : index
    %c0_4 = arith.constant 0 : index
    %3 = vector.load %arg2[%c0_3, %c0_4] : memref<1x64xf32, #tpu.memory_space<vmem>>, vector<1x64xf32>
    %4 = vector.broadcast %3 : vector<1x64xf32> to vector<16x64xf32>
    %5 = arith.addf %2, %4 : vector<16x64xf32>
    %cst_5 = arith.constant 5.000000e-01 : f32
    %6 = vector.broadcast %cst_5 : f32 to vector<16x64xf32>
    %7 = arith.mulf %6, %5 : vector<16x64xf32>
    %cst_6 = arith.constant 4.471500e-02 : f32
    %8 = vector.broadcast %cst_6 : f32 to vector<16x64xf32>
    %9 = arith.mulf %8, %5 : vector<16x64xf32>
    %10 = arith.mulf %9, %5 : vector<16x64xf32>
    %11 = arith.mulf %10, %5 : vector<16x64xf32>
    %12 = arith.addf %5, %11 : vector<16x64xf32>
    %cst_7 = arith.constant 0.797884583 : f32
    %13 = vector.broadcast %cst_7 : f32 to vector<16x64xf32>
    %14 = arith.mulf %13, %12 : vector<16x64xf32>
    %15 = math.tanh %14 : vector<16x64xf32>
    %cst_8 = arith.constant 1.000000e+00 : f32
    %16 = vector.broadcast %cst_8 : f32 to vector<16x64xf32>
    %17 = arith.addf %16, %15 : vector<16x64xf32>
    %18 = arith.mulf %7, %17 : vector<16x64xf32>
    %c0_9 = arith.constant 0 : index
    %c0_10 = arith.constant 0 : index
    %19 = vector.load %arg3[%c0_9, %c0_10] : memref<64x64xf32, #tpu.memory_space<vmem>>, vector<64x64xf32>
    %cst_11 = arith.constant dense<0.000000e+00> : vector<16x64xf32>
    %20 = tpu.matmul %18, %19, %cst_11 {dimension_numbers = #tpu.dot_dimension_numbers<[1], [0], [0], [1], [0, 0, 1, 1], [], []>} : vector<16x64xf32>, vector<64x64xf32>, vector<16x64xf32> -> vector<16x64xf32>
    %c0_12 = arith.constant 0 : index
    %c0_13 = arith.constant 0 : index
    %21 = vector.load %arg4[%c0_12, %c0_13] : memref<1x64xf32, #tpu.memory_space<vmem>>, vector<1x64xf32>
    %22 = vector.broadcast %21 : vector<1x64xf32> to vector<16x64xf32>
    %23 = arith.addf %20, %22 : vector<16x64xf32>
    %c0_14 = arith.constant 0 : index
    %c0_15 = arith.constant 0 : index
    %24 = vector.load %arg5[%c0_14, %c0_15] : memref<16x64xf32, #tpu.memory_space<vmem>>, vector<16x64xf32>
    tpu.vector_store %arg5[%c0_14, %c0_15], %23 {strides = array<i32>} : memref<16x64xf32, #tpu.memory_space<vmem>>, vector<16x64xf32>,
    return
  }
}

module attributes {stable_mosaic.version = 11 : i64} {
  func.func @kernel(%arg0: memref<6x32xf32, #tpu.memory_space<vmem>>, %arg1: memref<6x24xf32, #tpu.memory_space<vmem>>, %arg2: memref<24x32xf32, #tpu.memory_space<vmem>>, %arg3: memref<2x32x384xf32, #tpu.memory_space<vmem>>, %arg4: memref<2x1x416xf32, #tpu.memory_space<vmem>>, %arg5: memref<32x32xf32, #tpu.memory_space<vmem>>, %arg6: memref<1x96xf32, #tpu.memory_space<vmem>>, %arg7: memref<6x32xf32, #tpu.memory_space<vmem>>) attributes {dimension_semantics = [], scalar_prefetch = 0 : i64, scratch_operands = 0 : i64, tpu.core_type = #tpu.core_type<tc>} {
    %c0 = arith.constant 0 : index
    %c0_0 = arith.constant 0 : index
    %0 = vector.load %arg0[%c0, %c0_0] : memref<6x32xf32, #tpu.memory_space<vmem>>, vector<6x32xf32>
    %c0_1 = arith.constant 0 : index
    %c0_2 = arith.constant 0 : index
    %1 = vector.load %arg1[%c0_1, %c0_2] : memref<6x24xf32, #tpu.memory_space<vmem>>, vector<6x24xf32>
    %c0_3 = arith.constant 0 : index
    %c0_4 = arith.constant 0 : index
    %2 = vector.load %arg2[%c0_3, %c0_4] : memref<24x32xf32, #tpu.memory_space<vmem>>, vector<24x32xf32>
    %c0_5 = arith.constant 0 : index
    %c0_6 = arith.constant 0 : index
    %c0_7 = arith.constant 0 : index
    %3 = vector.load %arg3[%c0_5, %c0_6, %c0_7] : memref<2x32x384xf32, #tpu.memory_space<vmem>>, vector<1x32x96xf32>
    %4 = vector.shape_cast %3 : vector<1x32x96xf32> to vector<32x96xf32>
    %c0_8 = arith.constant 0 : index
    %c0_9 = arith.constant 0 : index
    %c96 = arith.constant 96 : index
    %5 = vector.load %arg3[%c0_8, %c0_9, %c96] : memref<2x32x384xf32, #tpu.memory_space<vmem>>, vector<1x32x32xf32>
    %6 = vector.shape_cast %5 : vector<1x32x32xf32> to vector<32x32xf32>
    %c0_10 = arith.constant 0 : index
    %c0_11 = arith.constant 0 : index
    %c128 = arith.constant 128 : index
    %7 = vector.load %arg3[%c0_10, %c0_11, %c128] : memref<2x32x384xf32, #tpu.memory_space<vmem>>, vector<1x32x128xf32>
    %8 = vector.shape_cast %7 : vector<1x32x128xf32> to vector<32x128xf32>
    %c0_12 = arith.constant 0 : index
    %c0_13 = arith.constant 0 : index
    %c256 = arith.constant 256 : index
    %9 = vector.load %arg3[%c0_12, %c0_13, %c256] : memref<2x32x384xf32, #tpu.memory_space<vmem>>, vector<1x32x128xf32>
    %10 = vector.shape_cast %9 : vector<1x32x128xf32> to vector<32x128xf32>
    %c0_14 = arith.constant 0 : index
    %c0_15 = arith.constant 0 : index
    %c0_16 = arith.constant 0 : index
    %11 = vector.load %arg4[%c0_14, %c0_15, %c0_16] : memref<2x1x416xf32, #tpu.memory_space<vmem>>, vector<1x1x32xf32>
    %12 = vector.shape_cast %11 : vector<1x1x32xf32> to vector<1x32xf32>
    %c0_17 = arith.constant 0 : index
    %c0_18 = arith.constant 0 : index
    %c32 = arith.constant 32 : index
    %13 = vector.load %arg4[%c0_17, %c0_18, %c32] : memref<2x1x416xf32, #tpu.memory_space<vmem>>, vector<1x1x32xf32>
    %14 = vector.shape_cast %13 : vector<1x1x32xf32> to vector<1x32xf32>
    %c0_19 = arith.constant 0 : index
    %c0_20 = arith.constant 0 : index
    %c64 = arith.constant 64 : index
    %15 = vector.load %arg4[%c0_19, %c0_20, %c64] : memref<2x1x416xf32, #tpu.memory_space<vmem>>, vector<1x1x96xf32>
    %16 = vector.shape_cast %15 : vector<1x1x96xf32> to vector<1x96xf32>
    %c0_21 = arith.constant 0 : index
    %c0_22 = arith.constant 0 : index
    %c160 = arith.constant 160 : index
    %17 = vector.load %arg4[%c0_21, %c0_22, %c160] : memref<2x1x416xf32, #tpu.memory_space<vmem>>, vector<1x1x32xf32>
    %18 = vector.shape_cast %17 : vector<1x1x32xf32> to vector<1x32xf32>
    %c0_23 = arith.constant 0 : index
    %c0_24 = arith.constant 0 : index
    %c192 = arith.constant 192 : index
    %19 = vector.load %arg4[%c0_23, %c0_24, %c192] : memref<2x1x416xf32, #tpu.memory_space<vmem>>, vector<1x1x32xf32>
    %20 = vector.shape_cast %19 : vector<1x1x32xf32> to vector<1x32xf32>
    %c0_25 = arith.constant 0 : index
    %c0_26 = arith.constant 0 : index
    %c224 = arith.constant 224 : index
    %21 = vector.load %arg4[%c0_25, %c0_26, %c224] : memref<2x1x416xf32, #tpu.memory_space<vmem>>, vector<1x1x32xf32>
    %22 = vector.shape_cast %21 : vector<1x1x32xf32> to vector<1x32xf32>
    %c0_27 = arith.constant 0 : index
    %c0_28 = arith.constant 0 : index
    %c256_29 = arith.constant 256 : index
    %23 = vector.load %arg4[%c0_27, %c0_28, %c256_29] : memref<2x1x416xf32, #tpu.memory_space<vmem>>, vector<1x1x128xf32>
    %24 = vector.shape_cast %23 : vector<1x1x128xf32> to vector<1x128xf32>
    %c0_30 = arith.constant 0 : index
    %c0_31 = arith.constant 0 : index
    %c384 = arith.constant 384 : index
    %25 = vector.load %arg4[%c0_30, %c0_31, %c384] : memref<2x1x416xf32, #tpu.memory_space<vmem>>, vector<1x1x32xf32>
    %26 = vector.shape_cast %25 : vector<1x1x32xf32> to vector<1x32xf32>
    %cst = arith.constant dense<0.000000e+00> : vector<6xf32>
    %27 = vector.multi_reduction <add>, %0, %cst [1] : vector<6x32xf32> to vector<6xf32>
    %28 = vector.shape_cast %27 : vector<6xf32> to vector<6x1xf32>
    %cst_32 = arith.constant 3.200000e+01 : f32
    %29 = vector.broadcast %cst_32 : f32 to vector<6x1xf32>
    %30 = arith.divf %28, %29 : vector<6x1xf32>
    %31 = vector.broadcast %30 : vector<6x1xf32> to vector<6x32xf32>
    %32 = arith.subf %0, %31 : vector<6x32xf32>
    %33 = arith.mulf %32, %32 : vector<6x32xf32>
    %cst_33 = arith.constant dense<0.000000e+00> : vector<6xf32>
    %34 = vector.multi_reduction <add>, %33, %cst_33 [1] : vector<6x32xf32> to vector<6xf32>
    %35 = vector.shape_cast %34 : vector<6xf32> to vector<6x1xf32>
    %cst_34 = arith.constant 3.200000e+01 : f32
    %36 = vector.broadcast %cst_34 : f32 to vector<6x1xf32>
    %37 = arith.divf %35, %36 : vector<6x1xf32>
    %38 = vector.broadcast %30 : vector<6x1xf32> to vector<6x32xf32>
    %39 = arith.subf %0, %38 : vector<6x32xf32>
    %cst_35 = arith.constant 9.99999974E-6 : f32
    %40 = vector.broadcast %cst_35 : f32 to vector<6x1xf32>
    %41 = arith.addf %37, %40 : vector<6x1xf32>
    %42 = math.rsqrt %41 : vector<6x1xf32>
    %43 = vector.broadcast %42 : vector<6x1xf32> to vector<6x32xf32>
    %44 = arith.mulf %39, %43 : vector<6x32xf32>
    %45 = vector.broadcast %12 : vector<1x32xf32> to vector<6x32xf32>
    %46 = arith.mulf %44, %45 : vector<6x32xf32>
    %47 = vector.broadcast %14 : vector<1x32xf32> to vector<6x32xf32>
    %48 = arith.addf %46, %47 : vector<6x32xf32>
    %cst_36 = arith.constant dense<0.000000e+00> : vector<6x96xf32>
    %49 = tpu.matmul %48, %4, %cst_36 {dimension_numbers = #tpu.dot_dimension_numbers<[1], [0], [0], [1], [0, 0, 1, 1], [], []>} : vector<6x32xf32>, vector<32x96xf32>, vector<6x96xf32> -> vector<6x96xf32>
    %50 = vector.broadcast %16 : vector<1x96xf32> to vector<6x96xf32>
    %51 = arith.addf %49, %50 : vector<6x96xf32>
    %52 = vector.extract_strided_slice %51 {offsets = [0, 0], sizes = [6, 32], strides = [1, 1]} : vector<6x96xf32> to vector<6x32xf32>
    %53 = vector.extract_strided_slice %51 {offsets = [0, 32], sizes = [6, 32], strides = [1, 1]} : vector<6x96xf32> to vector<6x32xf32>
    %54 = tpu.concatenate %53, %53, %53, %53 in 0 : vector<6x32xf32>, vector<6x32xf32>, vector<6x32xf32>, vector<6x32xf32> -> vector<24x32xf32>
    %55 = arith.mulf %54, %2 : vector<24x32xf32>
    %56 = vector.extract_strided_slice %51 {offsets = [0, 64], sizes = [6, 32], strides = [1, 1]} : vector<6x96xf32> to vector<6x32xf32>
    %57 = tpu.concatenate %56, %56, %56, %56 in 0 : vector<6x32xf32>, vector<6x32xf32>, vector<6x32xf32>, vector<6x32xf32> -> vector<24x32xf32>
    %58 = arith.mulf %57, %2 : vector<24x32xf32>
    %cst_37 = arith.constant dense<0.000000e+00> : vector<6x24xf32>
    %59 = tpu.matmul %52, %55, %cst_37 {dimension_numbers = #tpu.dot_dimension_numbers<[1], [1], [0], [0], [0, 0, 1, 0], [], []>} : vector<6x32xf32>, vector<24x32xf32>, vector<6x24xf32> -> vector<6x24xf32>
    %cst_38 = arith.constant 0.353553385 : f32
    %60 = vector.broadcast %cst_38 : f32 to vector<6x24xf32>
    %61 = arith.mulf %59, %60 : vector<6x24xf32>
    %62 = arith.addf %61, %1 : vector<6x24xf32>
    %cst_39 = arith.constant dense<0xFF800000> : vector<6xf32>
    %63 = vector.multi_reduction <maximumf>, %62, %cst_39 [1] : vector<6x24xf32> to vector<6xf32>
    %64 = vector.shape_cast %63 : vector<6xf32> to vector<6x1xf32>
    %65 = vector.broadcast %64 : vector<6x1xf32> to vector<6x24xf32>
    %66 = arith.subf %62, %65 : vector<6x24xf32>
    %67 = math.exp %66 : vector<6x24xf32>
    %cst_40 = arith.constant dense<0.000000e+00> : vector<6x32xf32>
    %68 = tpu.matmul %67, %58, %cst_40 {dimension_numbers = #tpu.dot_dimension_numbers<[1], [0], [0], [1], [0, 0, 1, 1], [], []>} : vector<6x24xf32>, vector<24x32xf32>, vector<6x32xf32> -> vector<6x32xf32>
    %cst_41 = arith.constant dense<0.000000e+00> : vector<6x32xf32>
    %69 = tpu.matmul %67, %2, %cst_41 {dimension_numbers = #tpu.dot_dimension_numbers<[1], [0], [0], [1], [0, 0, 1, 1], [], []>} : vector<6x24xf32>, vector<24x32xf32>, vector<6x32xf32> -> vector<6x32xf32>
    %70 = tpu.reciprocal %69 {approx = true} : vector<6x32xf32> -> vector<6x32xf32>
    %71 = arith.mulf %68, %70 : vector<6x32xf32>
    %cst_42 = arith.constant dense<0.000000e+00> : vector<6x32xf32>
    %72 = tpu.matmul %71, %6, %cst_42 {dimension_numbers = #tpu.dot_dimension_numbers<[1], [0], [0], [1], [0, 0, 1, 1], [], []>} : vector<6x32xf32>, vector<32x32xf32>, vector<6x32xf32> -> vector<6x32xf32>
    %73 = arith.addf %0, %72 : vector<6x32xf32>
    %74 = vector.broadcast %18 : vector<1x32xf32> to vector<6x32xf32>
    %75 = arith.addf %73, %74 : vector<6x32xf32>
    %cst_43 = arith.constant dense<0.000000e+00> : vector<6xf32>
    %76 = vector.multi_reduction <add>, %75, %cst_43 [1] : vector<6x32xf32> to vector<6xf32>
    %77 = vector.shape_cast %76 : vector<6xf32> to vector<6x1xf32>
    %cst_44 = arith.constant 3.200000e+01 : f32
    %78 = vector.broadcast %cst_44 : f32 to vector<6x1xf32>
    %79 = arith.divf %77, %78 : vector<6x1xf32>
    %80 = vector.broadcast %79 : vector<6x1xf32> to vector<6x32xf32>
    %81 = arith.subf %75, %80 : vector<6x32xf32>
    %82 = arith.mulf %81, %81 : vector<6x32xf32>
    %cst_45 = arith.constant dense<0.000000e+00> : vector<6xf32>
    %83 = vector.multi_reduction <add>, %82, %cst_45 [1] : vector<6x32xf32> to vector<6xf32>
    %84 = vector.shape_cast %83 : vector<6xf32> to vector<6x1xf32>
    %cst_46 = arith.constant 3.200000e+01 : f32
    %85 = vector.broadcast %cst_46 : f32 to vector<6x1xf32>
    %86 = arith.divf %84, %85 : vector<6x1xf32>
    %87 = vector.broadcast %79 : vector<6x1xf32> to vector<6x32xf32>
    %88 = arith.subf %75, %87 : vector<6x32xf32>
    %cst_47 = arith.constant 9.99999974E-6 : f32
    %89 = vector.broadcast %cst_47 : f32 to vector<6x1xf32>
    %90 = arith.addf %86, %89 : vector<6x1xf32>
    %91 = math.rsqrt %90 : vector<6x1xf32>
    %92 = vector.broadcast %91 : vector<6x1xf32> to vector<6x32xf32>
    %93 = arith.mulf %88, %92 : vector<6x32xf32>
    %94 = vector.broadcast %20 : vector<1x32xf32> to vector<6x32xf32>
    %95 = arith.mulf %93, %94 : vector<6x32xf32>
    %96 = vector.broadcast %22 : vector<1x32xf32> to vector<6x32xf32>
    %97 = arith.addf %95, %96 : vector<6x32xf32>
    %cst_48 = arith.constant dense<0.000000e+00> : vector<6x128xf32>
    %98 = tpu.matmul %97, %8, %cst_48 {dimension_numbers = #tpu.dot_dimension_numbers<[1], [0], [0], [1], [0, 0, 1, 1], [], []>} : vector<6x32xf32>, vector<32x128xf32>, vector<6x128xf32> -> vector<6x128xf32>
    %99 = vector.broadcast %24 : vector<1x128xf32> to vector<6x128xf32>
    %100 = arith.addf %98, %99 : vector<6x128xf32>
    %cst_49 = arith.constant 5.000000e-01 : f32
    %101 = vector.broadcast %cst_49 : f32 to vector<6x128xf32>
    %102 = arith.mulf %101, %100 : vector<6x128xf32>
    %cst_50 = arith.constant 4.471500e-02 : f32
    %103 = vector.broadcast %cst_50 : f32 to vector<6x128xf32>
    %104 = arith.mulf %103, %100 : vector<6x128xf32>
    %105 = arith.mulf %104, %100 : vector<6x128xf32>
    %106 = arith.mulf %105, %100 : vector<6x128xf32>
    %107 = arith.addf %100, %106 : vector<6x128xf32>
    %cst_51 = arith.constant 0.797884583 : f32
    %108 = vector.broadcast %cst_51 : f32 to vector<6x128xf32>
    %109 = arith.mulf %108, %107 : vector<6x128xf32>
    %110 = math.tanh %109 : vector<6x128xf32>
    %cst_52 = arith.constant 1.000000e+00 : f32
    %111 = vector.broadcast %cst_52 : f32 to vector<6x128xf32>
    %112 = arith.addf %111, %110 : vector<6x128xf32>
    %113 = arith.mulf %102, %112 : vector<6x128xf32>
    %cst_53 = arith.constant dense<0.000000e+00> : vector<6x32xf32>
    %114 = tpu.matmul %113, %10, %cst_53 {dimension_numbers = #tpu.dot_dimension_numbers<[1], [1], [0], [0], [0, 0, 1, 0], [], []>} : vector<6x128xf32>, vector<32x128xf32>, vector<6x32xf32> -> vector<6x32xf32>
    %115 = arith.addf %75, %114 : vector<6x32xf32>
    %116 = vector.broadcast %26 : vector<1x32xf32> to vector<6x32xf32>
    %117 = arith.addf %115, %116 : vector<6x32xf32>
    %c1 = arith.constant 1 : index
    %c0_54 = arith.constant 0 : index
    %c0_55 = arith.constant 0 : index
    %118 = vector.load %arg3[%c1, %c0_54, %c0_55] : memref<2x32x384xf32, #tpu.memory_space<vmem>>, vector<1x32x96xf32>
    %119 = vector.shape_cast %118 : vector<1x32x96xf32> to vector<32x96xf32>
    %c1_56 = arith.constant 1 : index
    %c0_57 = arith.constant 0 : index
    %c96_58 = arith.constant 96 : index
    %120 = vector.load %arg3[%c1_56, %c0_57, %c96_58] : memref<2x32x384xf32, #tpu.memory_space<vmem>>, vector<1x32x32xf32>
    %121 = vector.shape_cast %120 : vector<1x32x32xf32> to vector<32x32xf32>
    %c1_59 = arith.constant 1 : index
    %c0_60 = arith.constant 0 : index
    %c128_61 = arith.constant 128 : index
    %122 = vector.load %arg3[%c1_59, %c0_60, %c128_61] : memref<2x32x384xf32, #tpu.memory_space<vmem>>, vector<1x32x128xf32>
    %123 = vector.shape_cast %122 : vector<1x32x128xf32> to vector<32x128xf32>
    %c1_62 = arith.constant 1 : index
    %c0_63 = arith.constant 0 : index
    %c256_64 = arith.constant 256 : index
    %124 = vector.load %arg3[%c1_62, %c0_63, %c256_64] : memref<2x32x384xf32, #tpu.memory_space<vmem>>, vector<1x32x128xf32>
    %125 = vector.shape_cast %124 : vector<1x32x128xf32> to vector<32x128xf32>
    %c1_65 = arith.constant 1 : index
    %c0_66 = arith.constant 0 : index
    %c0_67 = arith.constant 0 : index
    %126 = vector.load %arg4[%c1_65, %c0_66, %c0_67] : memref<2x1x416xf32, #tpu.memory_space<vmem>>, vector<1x1x32xf32>
    %127 = vector.shape_cast %126 : vector<1x1x32xf32> to vector<1x32xf32>
    %c1_68 = arith.constant 1 : index
    %c0_69 = arith.constant 0 : index
    %c32_70 = arith.constant 32 : index
    %128 = vector.load %arg4[%c1_68, %c0_69, %c32_70] : memref<2x1x416xf32, #tpu.memory_space<vmem>>, vector<1x1x32xf32>
    %129 = vector.shape_cast %128 : vector<1x1x32xf32> to vector<1x32xf32>
    %c1_71 = arith.constant 1 : index
    %c0_72 = arith.constant 0 : index
    %c64_73 = arith.constant 64 : index
    %130 = vector.load %arg4[%c1_71, %c0_72, %c64_73] : memref<2x1x416xf32, #tpu.memory_space<vmem>>, vector<1x1x96xf32>
    %131 = vector.shape_cast %130 : vector<1x1x96xf32> to vector<1x96xf32>
    %c1_74 = arith.constant 1 : index
    %c0_75 = arith.constant 0 : index
    %c160_76 = arith.constant 160 : index
    %132 = vector.load %arg4[%c1_74, %c0_75, %c160_76] : memref<2x1x416xf32, #tpu.memory_space<vmem>>, vector<1x1x32xf32>
    %133 = vector.shape_cast %132 : vector<1x1x32xf32> to vector<1x32xf32>
    %c1_77 = arith.constant 1 : index
    %c0_78 = arith.constant 0 : index
    %c192_79 = arith.constant 192 : index
    %134 = vector.load %arg4[%c1_77, %c0_78, %c192_79] : memref<2x1x416xf32, #tpu.memory_space<vmem>>, vector<1x1x32xf32>
    %135 = vector.shape_cast %134 : vector<1x1x32xf32> to vector<1x32xf32>
    %c1_80 = arith.constant 1 : index
    %c0_81 = arith.constant 0 : index
    %c224_82 = arith.constant 224 : index
    %136 = vector.load %arg4[%c1_80, %c0_81, %c224_82] : memref<2x1x416xf32, #tpu.memory_space<vmem>>, vector<1x1x32xf32>
    %137 = vector.shape_cast %136 : vector<1x1x32xf32> to vector<1x32xf32>
    %c1_83 = arith.constant 1 : index
    %c0_84 = arith.constant 0 : index
    %c256_85 = arith.constant 256 : index
    %138 = vector.load %arg4[%c1_83, %c0_84, %c256_85] : memref<2x1x416xf32, #tpu.memory_space<vmem>>, vector<1x1x128xf32>
    %139 = vector.shape_cast %138 : vector<1x1x128xf32> to vector<1x128xf32>
    %c1_86 = arith.constant 1 : index
    %c0_87 = arith.constant 0 : index
    %c384_88 = arith.constant 384 : index
    %140 = vector.load %arg4[%c1_86, %c0_87, %c384_88] : memref<2x1x416xf32, #tpu.memory_space<vmem>>, vector<1x1x32xf32>
    %141 = vector.shape_cast %140 : vector<1x1x32xf32> to vector<1x32xf32>
    %cst_89 = arith.constant dense<0.000000e+00> : vector<6xf32>
    %142 = vector.multi_reduction <add>, %117, %cst_89 [1] : vector<6x32xf32> to vector<6xf32>
    %143 = vector.shape_cast %142 : vector<6xf32> to vector<6x1xf32>
    %cst_90 = arith.constant 3.200000e+01 : f32
    %144 = vector.broadcast %cst_90 : f32 to vector<6x1xf32>
    %145 = arith.divf %143, %144 : vector<6x1xf32>
    %146 = vector.broadcast %145 : vector<6x1xf32> to vector<6x32xf32>
    %147 = arith.subf %117, %146 : vector<6x32xf32>
    %148 = arith.mulf %147, %147 : vector<6x32xf32>
    %cst_91 = arith.constant dense<0.000000e+00> : vector<6xf32>
    %149 = vector.multi_reduction <add>, %148, %cst_91 [1] : vector<6x32xf32> to vector<6xf32>
    %150 = vector.shape_cast %149 : vector<6xf32> to vector<6x1xf32>
    %cst_92 = arith.constant 3.200000e+01 : f32
    %151 = vector.broadcast %cst_92 : f32 to vector<6x1xf32>
    %152 = arith.divf %150, %151 : vector<6x1xf32>
    %153 = vector.broadcast %145 : vector<6x1xf32> to vector<6x32xf32>
    %154 = arith.subf %117, %153 : vector<6x32xf32>
    %cst_93 = arith.constant 9.99999974E-6 : f32
    %155 = vector.broadcast %cst_93 : f32 to vector<6x1xf32>
    %156 = arith.addf %152, %155 : vector<6x1xf32>
    %157 = math.rsqrt %156 : vector<6x1xf32>
    %158 = vector.broadcast %157 : vector<6x1xf32> to vector<6x32xf32>
    %159 = arith.mulf %154, %158 : vector<6x32xf32>
    %160 = vector.broadcast %127 : vector<1x32xf32> to vector<6x32xf32>
    %161 = arith.mulf %159, %160 : vector<6x32xf32>
    %162 = vector.broadcast %129 : vector<1x32xf32> to vector<6x32xf32>
    %163 = arith.addf %161, %162 : vector<6x32xf32>
    %cst_94 = arith.constant dense<0.000000e+00> : vector<6x96xf32>
    %164 = tpu.matmul %163, %119, %cst_94 {dimension_numbers = #tpu.dot_dimension_numbers<[1], [0], [0], [1], [0, 0, 1, 1], [], []>} : vector<6x32xf32>, vector<32x96xf32>, vector<6x96xf32> -> vector<6x96xf32>
    %165 = vector.broadcast %131 : vector<1x96xf32> to vector<6x96xf32>
    %166 = arith.addf %164, %165 : vector<6x96xf32>
    %167 = vector.extract_strided_slice %166 {offsets = [0, 0], sizes = [6, 32], strides = [1, 1]} : vector<6x96xf32> to vector<6x32xf32>
    %168 = vector.extract_strided_slice %166 {offsets = [0, 32], sizes = [6, 32], strides = [1, 1]} : vector<6x96xf32> to vector<6x32xf32>
    %169 = tpu.concatenate %168, %168, %168, %168 in 0 : vector<6x32xf32>, vector<6x32xf32>, vector<6x32xf32>, vector<6x32xf32> -> vector<24x32xf32>
    %170 = arith.mulf %169, %2 : vector<24x32xf32>
    %171 = vector.extract_strided_slice %166 {offsets = [0, 64], sizes = [6, 32], strides = [1, 1]} : vector<6x96xf32> to vector<6x32xf32>
    %172 = tpu.concatenate %171, %171, %171, %171 in 0 : vector<6x32xf32>, vector<6x32xf32>, vector<6x32xf32>, vector<6x32xf32> -> vector<24x32xf32>
    %173 = arith.mulf %172, %2 : vector<24x32xf32>
    %cst_95 = arith.constant dense<0.000000e+00> : vector<6x24xf32>
    %174 = tpu.matmul %167, %170, %cst_95 {dimension_numbers = #tpu.dot_dimension_numbers<[1], [1], [0], [0], [0, 0, 1, 0], [], []>} : vector<6x32xf32>, vector<24x32xf32>, vector<6x24xf32> -> vector<6x24xf32>
    %cst_96 = arith.constant 0.353553385 : f32
    %175 = vector.broadcast %cst_96 : f32 to vector<6x24xf32>
    %176 = arith.mulf %174, %175 : vector<6x24xf32>
    %177 = arith.addf %176, %1 : vector<6x24xf32>
    %cst_97 = arith.constant dense<0xFF800000> : vector<6xf32>
    %178 = vector.multi_reduction <maximumf>, %177, %cst_97 [1] : vector<6x24xf32> to vector<6xf32>
    %179 = vector.shape_cast %178 : vector<6xf32> to vector<6x1xf32>
    %180 = vector.broadcast %179 : vector<6x1xf32> to vector<6x24xf32>
    %181 = arith.subf %177, %180 : vector<6x24xf32>
    %182 = math.exp %181 : vector<6x24xf32>
    %cst_98 = arith.constant dense<0.000000e+00> : vector<6x32xf32>
    %183 = tpu.matmul %182, %173, %cst_98 {dimension_numbers = #tpu.dot_dimension_numbers<[1], [0], [0], [1], [0, 0, 1, 1], [], []>} : vector<6x24xf32>, vector<24x32xf32>, vector<6x32xf32> -> vector<6x32xf32>
    %cst_99 = arith.constant dense<0.000000e+00> : vector<6x32xf32>
    %184 = tpu.matmul %182, %2, %cst_99 {dimension_numbers = #tpu.dot_dimension_numbers<[1], [0], [0], [1], [0, 0, 1, 1], [], []>} : vector<6x24xf32>, vector<24x32xf32>, vector<6x32xf32> -> vector<6x32xf32>
    %185 = tpu.reciprocal %184 {approx = true} : vector<6x32xf32> -> vector<6x32xf32>
    %186 = arith.mulf %183, %185 : vector<6x32xf32>
    %cst_100 = arith.constant dense<0.000000e+00> : vector<6x32xf32>
    %187 = tpu.matmul %186, %121, %cst_100 {dimension_numbers = #tpu.dot_dimension_numbers<[1], [0], [0], [1], [0, 0, 1, 1], [], []>} : vector<6x32xf32>, vector<32x32xf32>, vector<6x32xf32> -> vector<6x32xf32>
    %188 = arith.addf %117, %187 : vector<6x32xf32>
    %189 = vector.broadcast %133 : vector<1x32xf32> to vector<6x32xf32>
    %190 = arith.addf %188, %189 : vector<6x32xf32>
    %cst_101 = arith.constant dense<0.000000e+00> : vector<6xf32>
    %191 = vector.multi_reduction <add>, %190, %cst_101 [1] : vector<6x32xf32> to vector<6xf32>
    %192 = vector.shape_cast %191 : vector<6xf32> to vector<6x1xf32>
    %cst_102 = arith.constant 3.200000e+01 : f32
    %193 = vector.broadcast %cst_102 : f32 to vector<6x1xf32>
    %194 = arith.divf %192, %193 : vector<6x1xf32>
    %195 = vector.broadcast %194 : vector<6x1xf32> to vector<6x32xf32>
    %196 = arith.subf %190, %195 : vector<6x32xf32>
    %197 = arith.mulf %196, %196 : vector<6x32xf32>
    %cst_103 = arith.constant dense<0.000000e+00> : vector<6xf32>
    %198 = vector.multi_reduction <add>, %197, %cst_103 [1] : vector<6x32xf32> to vector<6xf32>
    %199 = vector.shape_cast %198 : vector<6xf32> to vector<6x1xf32>
    %cst_104 = arith.constant 3.200000e+01 : f32
    %200 = vector.broadcast %cst_104 : f32 to vector<6x1xf32>
    %201 = arith.divf %199, %200 : vector<6x1xf32>
    %202 = vector.broadcast %194 : vector<6x1xf32> to vector<6x32xf32>
    %203 = arith.subf %190, %202 : vector<6x32xf32>
    %cst_105 = arith.constant 9.99999974E-6 : f32
    %204 = vector.broadcast %cst_105 : f32 to vector<6x1xf32>
    %205 = arith.addf %201, %204 : vector<6x1xf32>
    %206 = math.rsqrt %205 : vector<6x1xf32>
    %207 = vector.broadcast %206 : vector<6x1xf32> to vector<6x32xf32>
    %208 = arith.mulf %203, %207 : vector<6x32xf32>
    %209 = vector.broadcast %135 : vector<1x32xf32> to vector<6x32xf32>
    %210 = arith.mulf %208, %209 : vector<6x32xf32>
    %211 = vector.broadcast %137 : vector<1x32xf32> to vector<6x32xf32>
    %212 = arith.addf %210, %211 : vector<6x32xf32>
    %cst_106 = arith.constant dense<0.000000e+00> : vector<6x128xf32>
    %213 = tpu.matmul %212, %123, %cst_106 {dimension_numbers = #tpu.dot_dimension_numbers<[1], [0], [0], [1], [0, 0, 1, 1], [], []>} : vector<6x32xf32>, vector<32x128xf32>, vector<6x128xf32> -> vector<6x128xf32>
    %214 = vector.broadcast %139 : vector<1x128xf32> to vector<6x128xf32>
    %215 = arith.addf %213, %214 : vector<6x128xf32>
    %cst_107 = arith.constant 5.000000e-01 : f32
    %216 = vector.broadcast %cst_107 : f32 to vector<6x128xf32>
    %217 = arith.mulf %216, %215 : vector<6x128xf32>
    %cst_108 = arith.constant 4.471500e-02 : f32
    %218 = vector.broadcast %cst_108 : f32 to vector<6x128xf32>
    %219 = arith.mulf %218, %215 : vector<6x128xf32>
    %220 = arith.mulf %219, %215 : vector<6x128xf32>
    %221 = arith.mulf %220, %215 : vector<6x128xf32>
    %222 = arith.addf %215, %221 : vector<6x128xf32>
    %cst_109 = arith.constant 0.797884583 : f32
    %223 = vector.broadcast %cst_109 : f32 to vector<6x128xf32>
    %224 = arith.mulf %223, %222 : vector<6x128xf32>
    %225 = math.tanh %224 : vector<6x128xf32>
    %cst_110 = arith.constant 1.000000e+00 : f32
    %226 = vector.broadcast %cst_110 : f32 to vector<6x128xf32>
    %227 = arith.addf %226, %225 : vector<6x128xf32>
    %228 = arith.mulf %217, %227 : vector<6x128xf32>
    %cst_111 = arith.constant dense<0.000000e+00> : vector<6x32xf32>
    %229 = tpu.matmul %228, %125, %cst_111 {dimension_numbers = #tpu.dot_dimension_numbers<[1], [1], [0], [0], [0, 0, 1, 0], [], []>} : vector<6x128xf32>, vector<32x128xf32>, vector<6x32xf32> -> vector<6x32xf32>
    %230 = arith.addf %190, %229 : vector<6x32xf32>
    %231 = vector.broadcast %141 : vector<1x32xf32> to vector<6x32xf32>
    %232 = arith.addf %230, %231 : vector<6x32xf32>
    %c0_112 = arith.constant 0 : index
    %c0_113 = arith.constant 0 : index
    %233 = vector.load %arg6[%c0_112, %c0_113] : memref<1x96xf32, #tpu.memory_space<vmem>>, vector<1x96xf32>
    %234 = vector.extract_strided_slice %233 {offsets = [0, 0], sizes = [1, 32], strides = [1, 1]} : vector<1x96xf32> to vector<1x32xf32>
    %235 = vector.extract_strided_slice %233 {offsets = [0, 32], sizes = [1, 32], strides = [1, 1]} : vector<1x96xf32> to vector<1x32xf32>
    %236 = vector.extract_strided_slice %233 {offsets = [0, 64], sizes = [1, 32], strides = [1, 1]} : vector<1x96xf32> to vector<1x32xf32>
    %cst_114 = arith.constant dense<0.000000e+00> : vector<6xf32>
    %237 = vector.multi_reduction <add>, %232, %cst_114 [1] : vector<6x32xf32> to vector<6xf32>
    %238 = vector.shape_cast %237 : vector<6xf32> to vector<6x1xf32>
    %cst_115 = arith.constant 3.200000e+01 : f32
    %239 = vector.broadcast %cst_115 : f32 to vector<6x1xf32>
    %240 = arith.divf %238, %239 : vector<6x1xf32>
    %241 = vector.broadcast %240 : vector<6x1xf32> to vector<6x32xf32>
    %242 = arith.subf %232, %241 : vector<6x32xf32>
    %243 = arith.mulf %242, %242 : vector<6x32xf32>
    %cst_116 = arith.constant dense<0.000000e+00> : vector<6xf32>
    %244 = vector.multi_reduction <add>, %243, %cst_116 [1] : vector<6x32xf32> to vector<6xf32>
    %245 = vector.shape_cast %244 : vector<6xf32> to vector<6x1xf32>
    %cst_117 = arith.constant 3.200000e+01 : f32
    %246 = vector.broadcast %cst_117 : f32 to vector<6x1xf32>
    %247 = arith.divf %245, %246 : vector<6x1xf32>
    %248 = vector.broadcast %240 : vector<6x1xf32> to vector<6x32xf32>
    %249 = arith.subf %232, %248 : vector<6x32xf32>
    %cst_118 = arith.constant 9.99999974E-6 : f32
    %250 = vector.broadcast %cst_118 : f32 to vector<6x1xf32>
    %251 = arith.addf %247, %250 : vector<6x1xf32>
    %252 = math.rsqrt %251 : vector<6x1xf32>
    %253 = vector.broadcast %252 : vector<6x1xf32> to vector<6x32xf32>
    %254 = arith.mulf %249, %253 : vector<6x32xf32>
    %255 = vector.broadcast %234 : vector<1x32xf32> to vector<6x32xf32>
    %256 = arith.mulf %254, %255 : vector<6x32xf32>
    %257 = vector.broadcast %235 : vector<1x32xf32> to vector<6x32xf32>
    %258 = arith.addf %256, %257 : vector<6x32xf32>
    %c0_119 = arith.constant 0 : index
    %c0_120 = arith.constant 0 : index
    %259 = vector.load %arg5[%c0_119, %c0_120] : memref<32x32xf32, #tpu.memory_space<vmem>>, vector<32x32xf32>
    %cst_121 = arith.constant dense<0.000000e+00> : vector<6x32xf32>
    %260 = tpu.matmul %258, %259, %cst_121 {dimension_numbers = #tpu.dot_dimension_numbers<[1], [0], [0], [1], [0, 0, 1, 1], [], []>} : vector<6x32xf32>, vector<32x32xf32>, vector<6x32xf32> -> vector<6x32xf32>
    %261 = vector.broadcast %236 : vector<1x32xf32> to vector<6x32xf32>
    %262 = arith.addf %260, %261 : vector<6x32xf32>
    %c0_122 = arith.constant 0 : index
    %c0_123 = arith.constant 0 : index
    %263 = vector.load %arg7[%c0_122, %c0_123] : memref<6x32xf32, #tpu.memory_space<vmem>>, vector<6x32xf32>
    tpu.vector_store %arg7[%c0_122, %c0_123], %262 {strides = array<i32>} : memref<6x32xf32, #tpu.memory_space<vmem>>, vector<6x32xf32>,
    return
  }
}

module attributes {stable_mosaic.version = 11 : i64} {
  func.func @kernel(%arg0: memref<18x32xf32, #tpu.memory_space<vmem>>, %arg1: memref<18x72xf32, #tpu.memory_space<vmem>>, %arg2: memref<72x32xf32, #tpu.memory_space<vmem>>, %arg3: memref<1x32x384xf32, #tpu.memory_space<vmem>>, %arg4: memref<1x1x416xf32, #tpu.memory_space<vmem>>, %arg5: memref<32x384xf32, #tpu.memory_space<vmem>>, %arg6: memref<1x448xf32, #tpu.memory_space<vmem>>, %arg7: memref<18x384xf32, #tpu.memory_space<vmem>>) attributes {dimension_semantics = [], scalar_prefetch = 0 : i64, scratch_operands = 0 : i64, tpu.core_type = #tpu.core_type<tc>} {
    %c0 = arith.constant 0 : index
    %c0_0 = arith.constant 0 : index
    %0 = vector.load %arg0[%c0, %c0_0] : memref<18x32xf32, #tpu.memory_space<vmem>>, vector<18x32xf32>
    %c0_1 = arith.constant 0 : index
    %c0_2 = arith.constant 0 : index
    %1 = vector.load %arg1[%c0_1, %c0_2] : memref<18x72xf32, #tpu.memory_space<vmem>>, vector<18x72xf32>
    %c0_3 = arith.constant 0 : index
    %c0_4 = arith.constant 0 : index
    %2 = vector.load %arg2[%c0_3, %c0_4] : memref<72x32xf32, #tpu.memory_space<vmem>>, vector<72x32xf32>
    %c0_5 = arith.constant 0 : index
    %c0_6 = arith.constant 0 : index
    %c0_7 = arith.constant 0 : index
    %3 = vector.load %arg3[%c0_5, %c0_6, %c0_7] : memref<1x32x384xf32, #tpu.memory_space<vmem>>, vector<1x32x96xf32>
    %4 = vector.shape_cast %3 : vector<1x32x96xf32> to vector<32x96xf32>
    %c0_8 = arith.constant 0 : index
    %c0_9 = arith.constant 0 : index
    %c96 = arith.constant 96 : index
    %5 = vector.load %arg3[%c0_8, %c0_9, %c96] : memref<1x32x384xf32, #tpu.memory_space<vmem>>, vector<1x32x32xf32>
    %6 = vector.shape_cast %5 : vector<1x32x32xf32> to vector<32x32xf32>
    %c0_10 = arith.constant 0 : index
    %c0_11 = arith.constant 0 : index
    %c128 = arith.constant 128 : index
    %7 = vector.load %arg3[%c0_10, %c0_11, %c128] : memref<1x32x384xf32, #tpu.memory_space<vmem>>, vector<1x32x128xf32>
    %8 = vector.shape_cast %7 : vector<1x32x128xf32> to vector<32x128xf32>
    %c0_12 = arith.constant 0 : index
    %c0_13 = arith.constant 0 : index
    %c256 = arith.constant 256 : index
    %9 = vector.load %arg3[%c0_12, %c0_13, %c256] : memref<1x32x384xf32, #tpu.memory_space<vmem>>, vector<1x32x128xf32>
    %10 = vector.shape_cast %9 : vector<1x32x128xf32> to vector<32x128xf32>
    %c0_14 = arith.constant 0 : index
    %c0_15 = arith.constant 0 : index
    %c0_16 = arith.constant 0 : index
    %11 = vector.load %arg4[%c0_14, %c0_15, %c0_16] : memref<1x1x416xf32, #tpu.memory_space<vmem>>, vector<1x1x32xf32>
    %12 = vector.shape_cast %11 : vector<1x1x32xf32> to vector<1x32xf32>
    %c0_17 = arith.constant 0 : index
    %c0_18 = arith.constant 0 : index
    %c32 = arith.constant 32 : index
    %13 = vector.load %arg4[%c0_17, %c0_18, %c32] : memref<1x1x416xf32, #tpu.memory_space<vmem>>, vector<1x1x32xf32>
    %14 = vector.shape_cast %13 : vector<1x1x32xf32> to vector<1x32xf32>
    %c0_19 = arith.constant 0 : index
    %c0_20 = arith.constant 0 : index
    %c64 = arith.constant 64 : index
    %15 = vector.load %arg4[%c0_19, %c0_20, %c64] : memref<1x1x416xf32, #tpu.memory_space<vmem>>, vector<1x1x96xf32>
    %16 = vector.shape_cast %15 : vector<1x1x96xf32> to vector<1x96xf32>
    %c0_21 = arith.constant 0 : index
    %c0_22 = arith.constant 0 : index
    %c160 = arith.constant 160 : index
    %17 = vector.load %arg4[%c0_21, %c0_22, %c160] : memref<1x1x416xf32, #tpu.memory_space<vmem>>, vector<1x1x32xf32>
    %18 = vector.shape_cast %17 : vector<1x1x32xf32> to vector<1x32xf32>
    %c0_23 = arith.constant 0 : index
    %c0_24 = arith.constant 0 : index
    %c192 = arith.constant 192 : index
    %19 = vector.load %arg4[%c0_23, %c0_24, %c192] : memref<1x1x416xf32, #tpu.memory_space<vmem>>, vector<1x1x32xf32>
    %20 = vector.shape_cast %19 : vector<1x1x32xf32> to vector<1x32xf32>
    %c0_25 = arith.constant 0 : index
    %c0_26 = arith.constant 0 : index
    %c224 = arith.constant 224 : index
    %21 = vector.load %arg4[%c0_25, %c0_26, %c224] : memref<1x1x416xf32, #tpu.memory_space<vmem>>, vector<1x1x32xf32>
    %22 = vector.shape_cast %21 : vector<1x1x32xf32> to vector<1x32xf32>
    %c0_27 = arith.constant 0 : index
    %c0_28 = arith.constant 0 : index
    %c256_29 = arith.constant 256 : index
    %23 = vector.load %arg4[%c0_27, %c0_28, %c256_29] : memref<1x1x416xf32, #tpu.memory_space<vmem>>, vector<1x1x128xf32>
    %24 = vector.shape_cast %23 : vector<1x1x128xf32> to vector<1x128xf32>
    %c0_30 = arith.constant 0 : index
    %c0_31 = arith.constant 0 : index
    %c384 = arith.constant 384 : index
    %25 = vector.load %arg4[%c0_30, %c0_31, %c384] : memref<1x1x416xf32, #tpu.memory_space<vmem>>, vector<1x1x32xf32>
    %26 = vector.shape_cast %25 : vector<1x1x32xf32> to vector<1x32xf32>
    %cst = arith.constant dense<0.000000e+00> : vector<18xf32>
    %27 = vector.multi_reduction <add>, %0, %cst [1] : vector<18x32xf32> to vector<18xf32>
    %28 = vector.shape_cast %27 : vector<18xf32> to vector<18x1xf32>
    %cst_32 = arith.constant 3.200000e+01 : f32
    %29 = vector.broadcast %cst_32 : f32 to vector<18x1xf32>
    %30 = arith.divf %28, %29 : vector<18x1xf32>
    %31 = vector.broadcast %30 : vector<18x1xf32> to vector<18x32xf32>
    %32 = arith.subf %0, %31 : vector<18x32xf32>
    %33 = arith.mulf %32, %32 : vector<18x32xf32>
    %cst_33 = arith.constant dense<0.000000e+00> : vector<18xf32>
    %34 = vector.multi_reduction <add>, %33, %cst_33 [1] : vector<18x32xf32> to vector<18xf32>
    %35 = vector.shape_cast %34 : vector<18xf32> to vector<18x1xf32>
    %cst_34 = arith.constant 3.200000e+01 : f32
    %36 = vector.broadcast %cst_34 : f32 to vector<18x1xf32>
    %37 = arith.divf %35, %36 : vector<18x1xf32>
    %38 = vector.broadcast %30 : vector<18x1xf32> to vector<18x32xf32>
    %39 = arith.subf %0, %38 : vector<18x32xf32>
    %cst_35 = arith.constant 9.99999974E-6 : f32
    %40 = vector.broadcast %cst_35 : f32 to vector<18x1xf32>
    %41 = arith.addf %37, %40 : vector<18x1xf32>
    %42 = math.rsqrt %41 : vector<18x1xf32>
    %43 = vector.broadcast %42 : vector<18x1xf32> to vector<18x32xf32>
    %44 = arith.mulf %39, %43 : vector<18x32xf32>
    %45 = vector.broadcast %12 : vector<1x32xf32> to vector<18x32xf32>
    %46 = arith.mulf %44, %45 : vector<18x32xf32>
    %47 = vector.broadcast %14 : vector<1x32xf32> to vector<18x32xf32>
    %48 = arith.addf %46, %47 : vector<18x32xf32>
    %cst_36 = arith.constant dense<0.000000e+00> : vector<18x96xf32>
    %49 = tpu.matmul %48, %4, %cst_36 {dimension_numbers = #tpu.dot_dimension_numbers<[1], [0], [0], [1], [0, 0, 1, 1], [], []>} : vector<18x32xf32>, vector<32x96xf32>, vector<18x96xf32> -> vector<18x96xf32>
    %50 = vector.broadcast %16 : vector<1x96xf32> to vector<18x96xf32>
    %51 = arith.addf %49, %50 : vector<18x96xf32>
    %52 = vector.extract_strided_slice %51 {offsets = [0, 0], sizes = [18, 32], strides = [1, 1]} : vector<18x96xf32> to vector<18x32xf32>
    %53 = vector.extract_strided_slice %51 {offsets = [0, 32], sizes = [18, 32], strides = [1, 1]} : vector<18x96xf32> to vector<18x32xf32>
    %54 = tpu.concatenate %53, %53, %53, %53 in 0 : vector<18x32xf32>, vector<18x32xf32>, vector<18x32xf32>, vector<18x32xf32> -> vector<72x32xf32>
    %55 = arith.mulf %54, %2 : vector<72x32xf32>
    %56 = vector.extract_strided_slice %51 {offsets = [0, 64], sizes = [18, 32], strides = [1, 1]} : vector<18x96xf32> to vector<18x32xf32>
    %57 = tpu.concatenate %56, %56, %56, %56 in 0 : vector<18x32xf32>, vector<18x32xf32>, vector<18x32xf32>, vector<18x32xf32> -> vector<72x32xf32>
    %58 = arith.mulf %57, %2 : vector<72x32xf32>
    %cst_37 = arith.constant dense<0.000000e+00> : vector<18x72xf32>
    %59 = tpu.matmul %52, %55, %cst_37 {dimension_numbers = #tpu.dot_dimension_numbers<[1], [1], [0], [0], [0, 0, 1, 0], [], []>} : vector<18x32xf32>, vector<72x32xf32>, vector<18x72xf32> -> vector<18x72xf32>
    %cst_38 = arith.constant 0.353553385 : f32
    %60 = vector.broadcast %cst_38 : f32 to vector<18x72xf32>
    %61 = arith.mulf %59, %60 : vector<18x72xf32>
    %62 = arith.addf %61, %1 : vector<18x72xf32>
    %cst_39 = arith.constant dense<0xFF800000> : vector<18xf32>
    %63 = vector.multi_reduction <maximumf>, %62, %cst_39 [1] : vector<18x72xf32> to vector<18xf32>
    %64 = vector.shape_cast %63 : vector<18xf32> to vector<18x1xf32>
    %65 = vector.broadcast %64 : vector<18x1xf32> to vector<18x72xf32>
    %66 = arith.subf %62, %65 : vector<18x72xf32>
    %67 = math.exp %66 : vector<18x72xf32>
    %cst_40 = arith.constant dense<0.000000e+00> : vector<18x32xf32>
    %68 = tpu.matmul %67, %58, %cst_40 {dimension_numbers = #tpu.dot_dimension_numbers<[1], [0], [0], [1], [0, 0, 1, 1], [], []>} : vector<18x72xf32>, vector<72x32xf32>, vector<18x32xf32> -> vector<18x32xf32>
    %cst_41 = arith.constant dense<0.000000e+00> : vector<18x32xf32>
    %69 = tpu.matmul %67, %2, %cst_41 {dimension_numbers = #tpu.dot_dimension_numbers<[1], [0], [0], [1], [0, 0, 1, 1], [], []>} : vector<18x72xf32>, vector<72x32xf32>, vector<18x32xf32> -> vector<18x32xf32>
    %70 = tpu.reciprocal %69 {approx = true} : vector<18x32xf32> -> vector<18x32xf32>
    %71 = arith.mulf %68, %70 : vector<18x32xf32>
    %cst_42 = arith.constant dense<0.000000e+00> : vector<18x32xf32>
    %72 = tpu.matmul %71, %6, %cst_42 {dimension_numbers = #tpu.dot_dimension_numbers<[1], [0], [0], [1], [0, 0, 1, 1], [], []>} : vector<18x32xf32>, vector<32x32xf32>, vector<18x32xf32> -> vector<18x32xf32>
    %73 = arith.addf %0, %72 : vector<18x32xf32>
    %74 = vector.broadcast %18 : vector<1x32xf32> to vector<18x32xf32>
    %75 = arith.addf %73, %74 : vector<18x32xf32>
    %cst_43 = arith.constant dense<0.000000e+00> : vector<18xf32>
    %76 = vector.multi_reduction <add>, %75, %cst_43 [1] : vector<18x32xf32> to vector<18xf32>
    %77 = vector.shape_cast %76 : vector<18xf32> to vector<18x1xf32>
    %cst_44 = arith.constant 3.200000e+01 : f32
    %78 = vector.broadcast %cst_44 : f32 to vector<18x1xf32>
    %79 = arith.divf %77, %78 : vector<18x1xf32>
    %80 = vector.broadcast %79 : vector<18x1xf32> to vector<18x32xf32>
    %81 = arith.subf %75, %80 : vector<18x32xf32>
    %82 = arith.mulf %81, %81 : vector<18x32xf32>
    %cst_45 = arith.constant dense<0.000000e+00> : vector<18xf32>
    %83 = vector.multi_reduction <add>, %82, %cst_45 [1] : vector<18x32xf32> to vector<18xf32>
    %84 = vector.shape_cast %83 : vector<18xf32> to vector<18x1xf32>
    %cst_46 = arith.constant 3.200000e+01 : f32
    %85 = vector.broadcast %cst_46 : f32 to vector<18x1xf32>
    %86 = arith.divf %84, %85 : vector<18x1xf32>
    %87 = vector.broadcast %79 : vector<18x1xf32> to vector<18x32xf32>
    %88 = arith.subf %75, %87 : vector<18x32xf32>
    %cst_47 = arith.constant 9.99999974E-6 : f32
    %89 = vector.broadcast %cst_47 : f32 to vector<18x1xf32>
    %90 = arith.addf %86, %89 : vector<18x1xf32>
    %91 = math.rsqrt %90 : vector<18x1xf32>
    %92 = vector.broadcast %91 : vector<18x1xf32> to vector<18x32xf32>
    %93 = arith.mulf %88, %92 : vector<18x32xf32>
    %94 = vector.broadcast %20 : vector<1x32xf32> to vector<18x32xf32>
    %95 = arith.mulf %93, %94 : vector<18x32xf32>
    %96 = vector.broadcast %22 : vector<1x32xf32> to vector<18x32xf32>
    %97 = arith.addf %95, %96 : vector<18x32xf32>
    %cst_48 = arith.constant dense<0.000000e+00> : vector<18x128xf32>
    %98 = tpu.matmul %97, %8, %cst_48 {dimension_numbers = #tpu.dot_dimension_numbers<[1], [0], [0], [1], [0, 0, 1, 1], [], []>} : vector<18x32xf32>, vector<32x128xf32>, vector<18x128xf32> -> vector<18x128xf32>
    %99 = vector.broadcast %24 : vector<1x128xf32> to vector<18x128xf32>
    %100 = arith.addf %98, %99 : vector<18x128xf32>
    %cst_49 = arith.constant 5.000000e-01 : f32
    %101 = vector.broadcast %cst_49 : f32 to vector<18x128xf32>
    %102 = arith.mulf %101, %100 : vector<18x128xf32>
    %cst_50 = arith.constant 4.471500e-02 : f32
    %103 = vector.broadcast %cst_50 : f32 to vector<18x128xf32>
    %104 = arith.mulf %103, %100 : vector<18x128xf32>
    %105 = arith.mulf %104, %100 : vector<18x128xf32>
    %106 = arith.mulf %105, %100 : vector<18x128xf32>
    %107 = arith.addf %100, %106 : vector<18x128xf32>
    %cst_51 = arith.constant 0.797884583 : f32
    %108 = vector.broadcast %cst_51 : f32 to vector<18x128xf32>
    %109 = arith.mulf %108, %107 : vector<18x128xf32>
    %110 = math.tanh %109 : vector<18x128xf32>
    %cst_52 = arith.constant 1.000000e+00 : f32
    %111 = vector.broadcast %cst_52 : f32 to vector<18x128xf32>
    %112 = arith.addf %111, %110 : vector<18x128xf32>
    %113 = arith.mulf %102, %112 : vector<18x128xf32>
    %cst_53 = arith.constant dense<0.000000e+00> : vector<18x32xf32>
    %114 = tpu.matmul %113, %10, %cst_53 {dimension_numbers = #tpu.dot_dimension_numbers<[1], [1], [0], [0], [0, 0, 1, 0], [], []>} : vector<18x128xf32>, vector<32x128xf32>, vector<18x32xf32> -> vector<18x32xf32>
    %115 = arith.addf %75, %114 : vector<18x32xf32>
    %116 = vector.broadcast %26 : vector<1x32xf32> to vector<18x32xf32>
    %117 = arith.addf %115, %116 : vector<18x32xf32>
    %c0_54 = arith.constant 0 : index
    %c0_55 = arith.constant 0 : index
    %118 = vector.load %arg6[%c0_54, %c0_55] : memref<1x448xf32, #tpu.memory_space<vmem>>, vector<1x448xf32>
    %119 = vector.extract_strided_slice %118 {offsets = [0, 0], sizes = [1, 32], strides = [1, 1]} : vector<1x448xf32> to vector<1x32xf32>
    %120 = vector.extract_strided_slice %118 {offsets = [0, 32], sizes = [1, 32], strides = [1, 1]} : vector<1x448xf32> to vector<1x32xf32>
    %121 = vector.extract_strided_slice %118 {offsets = [0, 64], sizes = [1, 384], strides = [1, 1]} : vector<1x448xf32> to vector<1x384xf32>
    %cst_56 = arith.constant dense<0.000000e+00> : vector<18xf32>
    %122 = vector.multi_reduction <add>, %117, %cst_56 [1] : vector<18x32xf32> to vector<18xf32>
    %123 = vector.shape_cast %122 : vector<18xf32> to vector<18x1xf32>
    %cst_57 = arith.constant 3.200000e+01 : f32
    %124 = vector.broadcast %cst_57 : f32 to vector<18x1xf32>
    %125 = arith.divf %123, %124 : vector<18x1xf32>
    %126 = vector.broadcast %125 : vector<18x1xf32> to vector<18x32xf32>
    %127 = arith.subf %117, %126 : vector<18x32xf32>
    %128 = arith.mulf %127, %127 : vector<18x32xf32>
    %cst_58 = arith.constant dense<0.000000e+00> : vector<18xf32>
    %129 = vector.multi_reduction <add>, %128, %cst_58 [1] : vector<18x32xf32> to vector<18xf32>
    %130 = vector.shape_cast %129 : vector<18xf32> to vector<18x1xf32>
    %cst_59 = arith.constant 3.200000e+01 : f32
    %131 = vector.broadcast %cst_59 : f32 to vector<18x1xf32>
    %132 = arith.divf %130, %131 : vector<18x1xf32>
    %133 = vector.broadcast %125 : vector<18x1xf32> to vector<18x32xf32>
    %134 = arith.subf %117, %133 : vector<18x32xf32>
    %cst_60 = arith.constant 9.99999974E-6 : f32
    %135 = vector.broadcast %cst_60 : f32 to vector<18x1xf32>
    %136 = arith.addf %132, %135 : vector<18x1xf32>
    %137 = math.rsqrt %136 : vector<18x1xf32>
    %138 = vector.broadcast %137 : vector<18x1xf32> to vector<18x32xf32>
    %139 = arith.mulf %134, %138 : vector<18x32xf32>
    %140 = vector.broadcast %119 : vector<1x32xf32> to vector<18x32xf32>
    %141 = arith.mulf %139, %140 : vector<18x32xf32>
    %142 = vector.broadcast %120 : vector<1x32xf32> to vector<18x32xf32>
    %143 = arith.addf %141, %142 : vector<18x32xf32>
    %c0_61 = arith.constant 0 : index
    %c0_62 = arith.constant 0 : index
    %144 = vector.load %arg5[%c0_61, %c0_62] : memref<32x384xf32, #tpu.memory_space<vmem>>, vector<32x384xf32>
    %cst_63 = arith.constant dense<0.000000e+00> : vector<18x384xf32>
    %145 = tpu.matmul %143, %144, %cst_63 {dimension_numbers = #tpu.dot_dimension_numbers<[1], [0], [0], [1], [0, 0, 1, 1], [], []>} : vector<18x32xf32>, vector<32x384xf32>, vector<18x384xf32> -> vector<18x384xf32>
    %146 = vector.broadcast %121 : vector<1x384xf32> to vector<18x384xf32>
    %147 = arith.addf %145, %146 : vector<18x384xf32>
    %c0_64 = arith.constant 0 : index
    %c0_65 = arith.constant 0 : index
    %148 = vector.load %arg7[%c0_64, %c0_65] : memref<18x384xf32, #tpu.memory_space<vmem>>, vector<18x384xf32>
    tpu.vector_store %arg7[%c0_64, %c0_65], %147 {strides = array<i32>} : memref<18x384xf32, #tpu.memory_space<vmem>>, vector<18x384xf32>,
    return
  }
}

</mosaic_0001>

<llo_original>
// kernel: tile.11
$region0: #{tile.11}
  %s0 = inlined_call_operand.vmem [shape: f32[6,4,6], index: 0, kind: input, shape index: {}]
  %s1 = inlined_call_operand.vmem [shape: f32[6,24], index: 1, kind: output, shape index: {}]
  $region1: #{tile.11} parent=0
    #allocation0 [shape = 'u8[24576]{0}', space=vmem, size = 0x6000, scoped, tag = 'scoped mem for input reshape']
    %s3 = ssub.s32 16, 1
    %s4 = scalar_lea.vmem %s0, 20
    %v5 = vld [vmem:[%s4] sm:%s3]
    %s6 = scalar_lea.vmem [#allocation0], 40
    %7 = vst [vmem:[%s6] sm:%s3] %v5
    %s8 = scalar_lea.vmem %s0, 16
    %v9 = vld [vmem:[%s8] sm:%s3]
    %s10 = scalar_lea.vmem [#allocation0], 32
    %11 = vst [vmem:[%s10] sm:%s3] %v9
    %s12 = scalar_lea.vmem %s0, 12
    %v13 = vld [vmem:[%s12] sm:%s3]
    %s14 = scalar_lea.vmem [#allocation0], 24
    %15 = vst [vmem:[%s14] sm:%s3] %v13
    %s16 = scalar_lea.vmem %s0, 8
    %v17 = vld [vmem:[%s16] sm:%s3]
    %s18 = scalar_lea.vmem [#allocation0], 16
    %19 = vst [vmem:[%s18] sm:%s3] %v17
    %s20 = scalar_lea.vmem %s0, 4
    %v21 = vld [vmem:[%s20] sm:%s3]
    %s22 = scalar_lea.vmem [#allocation0], 8
    %23 = vst [vmem:[%s22] sm:%s3] %v21
    %v24 = vld [vmem:[%s0] sm:%s3]
    %25 = vst [vmem:[#allocation0] sm:%s3] %v24
    %v26 = vld [vmem:[#allocation0] ss:$8 sm:$0xf]
    %s27 = smov 48
    %v28 = vld [vmem:[#allocation0] ss:$8 sm:%s27]
    %vm29 = vcmask 1045508
    %v30 = vsel %vm29, %v28, %v26
    %vm31 = vcmask 48128
    %32 = vst.msk [vmem:[%s1] sm:$0x3f] %vm31, %v30
    %s33 = scalar_lea.vmem [#allocation0], 3
    %v34 = vld [vmem:[%s33] ss:$8 sm:$0xf]
    %s35 = scalar_lea.vmem [#allocation0], 3
    %s36 = smov 48
    %v37 = vld [vmem:[%s35] ss:$8 sm:%s36]
    %vm38 = vcmask 1045508
    %v39 = vsel %vm38, %v37, %v34
    %40 = vrot.lane.b32.xlu0 %v39, 18
    %v41 = vpop.permute.xlu0 %40
    %vm42 = vcmask 195728
    %43 = vst.msk [vmem:[%s1] sm:$0x3f] %vm42, %v41
    %s44 = scalar_lea.vmem [#allocation0], 2
    %v45 = vld [vmem:[%s44] ss:$8 sm:$0xf]
    %s46 = scalar_lea.vmem [#allocation0], 2
    %s47 = smov 48
    %v48 = vld [vmem:[%s46] ss:$8 sm:%s47]
    %vm49 = vcmask 1045508
    %v50 = vsel %vm49, %v48, %v45
    %51 = vrot.lane.b32.xlu0 %v50, 12
    %v52 = vpop.permute.xlu0 %51
    %vm53 = vcmask 146528
    %54 = vst.msk [vmem:[%s1] sm:$0x3f] %vm53, %v52
    %s55 = scalar_lea.vmem [#allocation0], 1
    %v56 = vld [vmem:[%s55] ss:$8 sm:$0xf]
    %s57 = scalar_lea.vmem [#allocation0], 1
    %s58 = smov 48
    %v59 = vld [vmem:[%s57] ss:$8 sm:%s58]
    %vm60 = vcmask 1045508
    %v61 = vsel %vm60, %v59, %v56
    %62 = vrot.lane.b32.xlu0 %v61, 6
    %v63 = vpop.permute.xlu0 %62
    %vm64 = vcmask 97328
    %65 = vst.msk [vmem:[%s1] sm:$0x3f] %vm64, %v63

// kernel: tile.15
$region0: #{tile.15}
  %s0 = inlined_call_operand.vmem [shape: f32[18,4,18], index: 0, kind: input, shape index: {}]
  %s1 = inlined_call_operand.vmem [shape: f32[18,72], index: 1, kind: output, shape index: {}]
  $region1: #{tile.15} parent=0
    #allocation0 [shape = 'u8[73728]{0}', space=vmem, size = 0x12000, scoped, tag = 'scoped mem for input reshape']
    %s3 = ssub.s32 16, 1
    %s4 = scalar_lea.vmem %s0, 68
    %v5 = vld [vmem:[%s4] sm:%s3]
    %s6 = scalar_lea.vmem [#allocation0], 136
    %7 = vst [vmem:[%s6] sm:%s3] %v5
    %s8 = scalar_lea.vmem %s0, 64
    %v9 = vld [vmem:[%s8] sm:%s3]
    %s10 = scalar_lea.vmem [#allocation0], 128
    %11 = vst [vmem:[%s10] sm:%s3] %v9
    %s12 = scalar_lea.vmem %s0, 60
    %v13 = vld [vmem:[%s12] sm:%s3]
    %s14 = scalar_lea.vmem [#allocation0], 120
    %15 = vst [vmem:[%s14] sm:%s3] %v13
    %s16 = scalar_lea.vmem %s0, 56
    %v17 = vld [vmem:[%s16] sm:%s3]
    %s18 = scalar_lea.vmem [#allocation0], 112
    %19 = vst [vmem:[%s18] sm:%s3] %v17
    %s20 = scalar_lea.vmem %s0, 52
    %v21 = vld [vmem:[%s20] sm:%s3]
    %s22 = scalar_lea.vmem [#allocation0], 104
    %23 = vst [vmem:[%s22] sm:%s3] %v21
    %s24 = scalar_lea.vmem %s0, 48
    %v25 = vld [vmem:[%s24] sm:%s3]
    %s26 = scalar_lea.vmem [#allocation0], 96
    %27 = vst [vmem:[%s26] sm:%s3] %v25
    %s28 = scalar_lea.vmem %s0, 44
    %v29 = vld [vmem:[%s28] sm:%s3]
    %s30 = scalar_lea.vmem [#allocation0], 88
    %31 = vst [vmem:[%s30] sm:%s3] %v29
    %s32 = scalar_lea.vmem %s0, 40
    %v33 = vld [vmem:[%s32] sm:%s3]
    %s34 = scalar_lea.vmem [#allocation0], 80
    %35 = vst [vmem:[%s34] sm:%s3] %v33
    %s36 = scalar_lea.vmem %s0, 36
    %v37 = vld [vmem:[%s36] sm:%s3]
    %s38 = scalar_lea.vmem [#allocation0], 72
    %39 = vst [vmem:[%s38] sm:%s3] %v37
    %s40 = scalar_lea.vmem %s0, 32
    %v41 = vld [vmem:[%s40] sm:%s3]
    %s42 = scalar_lea.vmem [#allocation0], 64
    %43 = vst [vmem:[%s42] sm:%s3] %v41
    %s44 = scalar_lea.vmem %s0, 28
    %v45 = vld [vmem:[%s44] sm:%s3]
    %s46 = scalar_lea.vmem [#allocation0], 56
    %47 = vst [vmem:[%s46] sm:%s3] %v45
    %s48 = scalar_lea.vmem %s0, 24
    %v49 = vld [vmem:[%s48] sm:%s3]
    %s50 = scalar_lea.vmem [#allocation0], 48
    %51 = vst [vmem:[%s50] sm:%s3] %v49
    %s52 = scalar_lea.vmem %s0, 20
    %v53 = vld [vmem:[%s52] sm:%s3]
    %s54 = scalar_lea.vmem [#allocation0], 40
    %55 = vst [vmem:[%s54] sm:%s3] %v53
    %s56 = scalar_lea.vmem %s0, 16
    %v57 = vld [vmem:[%s56] sm:%s3]
    %s58 = scalar_lea.vmem [#allocation0], 32
    %59 = vst [vmem:[%s58] sm:%s3] %v57
    %s60 = scalar_lea.vmem %s0, 12
    %v61 = vld [vmem:[%s60] sm:%s3]
    %s62 = scalar_lea.vmem [#allocation0], 24
    %63 = vst [vmem:[%s62] sm:%s3] %v61
    %s64 = scalar_lea.vmem %s0, 8
    %v65 = vld [vmem:[%s64] sm:%s3]
    %s66 = scalar_lea.vmem [#allocation0], 16
    %67 = vst [vmem:[%s66] sm:%s3] %v65
    %s68 = scalar_lea.vmem %s0, 4
    %v69 = vld [vmem:[%s68] sm:%s3]
    %s70 = scalar_lea.vmem [#allocation0], 8
    %71 = vst [vmem:[%s70] sm:%s3] %v69
    %v72 = vld [vmem:[%s0] sm:%s3]
    %73 = vst [vmem:[#allocation0] sm:%s3] %v72
    %v74 = vld [vmem:[#allocation0] ss:$8 sm:$0xf]
    %v75 = vld [vmem:[#allocation0] ss:$8 sm:$0xf0]
    %vm76 = vcmask 1047556
    %v77 = vsel %vm76, %v75, %v74
    %vm78 = vcmask 146432
    %79 = vst.msk [vmem:[%s1] sm:$0xff] %vm78, %v77
    %s80 = scalar_lea.vmem [#allocation0], 64
    %v81 = vld [vmem:[%s80] ss:$8 sm:$0xf]
    %s82 = scalar_lea.vmem [#allocation0], 64
    %v83 = vld [vmem:[%s82] ss:$8 sm:$0xf0]
    %vm84 = vcmask 1047556
    %v85 = vsel %vm84, %v83, %v81
    %vm86 = vcmask 146432
    %s87 = scalar_lea.vmem %s1, 8
    %88 = vst.msk [vmem:[%s87] sm:$0xff] %vm86, %v85
    %s89 = scalar_lea.vmem [#allocation0], 128
    %s90 = smov 3
    %v91 = vld [vmem:[%s89] ss:$8 sm:%s90]
    %vm92 = vcmask 146432
    %s93 = scalar_lea.vmem %s1, 16
    %94 = vst.msk [vmem:[%s93] sm:$0x3] %vm92, %v91
    %s95 = scalar_lea.vmem [#allocation0], 3
    %v96 = vld [vmem:[%s95] ss:$8 sm:$0xf]
    %s97 = scalar_lea.vmem [#allocation0], 3
    %v98 = vld [vmem:[%s97] ss:$8 sm:$0xf0]
    %vm99 = vcmask 1047556
    %v100 = vsel %vm99, %v98, %v96
    %101 = vrot.lane.b32.xlu0 %v100, 54
    %v102 = vpop.permute.xlu0 %101
    %vm103 = vcmask 589232
    %104 = vst.msk [vmem:[%s1] sm:$0xff] %vm103, %v102
    %s105 = scalar_lea.vmem [#allocation0], 67
    %v106 = vld [vmem:[%s105] ss:$8 sm:$0xf]
    %s107 = scalar_lea.vmem [#allocation0], 67
    %v108 = vld [vmem:[%s107] ss:$8 sm:$0xf0]
    %vm109 = vcmask 1047556
    %v110 = vsel %vm109, %v108, %v106
    %111 = vrot.lane.b32.xlu0 %v110, 54
    %v112 = vpop.permute.xlu0 %111
    %vm113 = vcmask 589232
    %s114 = scalar_lea.vmem %s1, 8
    %115 = vst.msk [vmem:[%s114] sm:$0xff] %vm113, %v112
    %s116 = scalar_lea.vmem [#allocation0], 131
    %s117 = smov 3
    %v118 = vld [vmem:[%s116] ss:$8 sm:%s117]
    %119 = vrot.lane.b32.xlu0 %v118, 54
    %v120 = vpop.permute.xlu0 %119
    %vm121 = vcmask 589232
    %s122 = scalar_lea.vmem %s1, 16
    %123 = vst.msk [vmem:[%s122] sm:$0x3] %vm121, %v120
    %s124 = scalar_lea.vmem [#allocation0], 2
    %v125 = vld [vmem:[%s124] ss:$8 sm:$0xf]
    %s126 = scalar_lea.vmem [#allocation0], 2
    %v127 = vld [vmem:[%s126] ss:$8 sm:$0xf0]
    %vm128 = vcmask 1047556
    %v129 = vsel %vm128, %v127, %v125
    %130 = vrot.lane.b32.xlu0 %v129, 36
    %v131 = vpop.permute.xlu0 %130
    %vm132 = vcmask 441632
    %133 = vst.msk [vmem:[%s1] sm:$0xff] %vm132, %v131
    %s134 = scalar_lea.vmem [#allocation0], 66
    %v135 = vld [vmem:[%s134] ss:$8 sm:$0xf]
    %s136 = scalar_lea.vmem [#allocation0], 66
    %v137 = vld [vmem:[%s136] ss:$8 sm:$0xf0]
    %vm138 = vcmask 1047556
    %v139 = vsel %vm138, %v137, %v135
    %140 = vrot.lane.b32.xlu0 %v139, 36
    %v141 = vpop.permute.xlu0 %140
    %vm142 = vcmask 441632
    %s143 = scalar_lea.vmem %s1, 8
    %144 = vst.msk [vmem:[%s143] sm:$0xff] %vm142, %v141
    %s145 = scalar_lea.vmem [#allocation0], 130
    %s146 = smov 3
    %v147 = vld [vmem:[%s145] ss:$8 sm:%s146]
    %148 = vrot.lane.b32.xlu0 %v147, 36
    %v149 = vpop.permute.xlu0 %148
    %vm150 = vcmask 441632
    %s151 = scalar_lea.vmem %s1, 16
    %152 = vst.msk [vmem:[%s151] sm:$0x3] %vm150, %v149
    %s153 = scalar_lea.vmem [#allocation0], 1
    %v154 = vld [vmem:[%s153] ss:$8 sm:$0xf]
    %s155 = scalar_lea.vmem [#allocation0], 1
    %v156 = vld [vmem:[%s155] ss:$8 sm:$0xf0]
    %vm157 = vcmask 1047556
    %v158 = vsel %vm157, %v156, %v154
    %159 = vrot.lane.b32.xlu0 %v158, 18
    %v160 = vpop.permute.xlu0 %159
    %vm161 = vcmask 294032
    %162 = vst.msk [vmem:[%s1] sm:$0xff] %vm161, %v160
    %s163 = scalar_lea.vmem [#allocation0], 65
    %v164 = vld [vmem:[%s163] ss:$8 sm:$0xf]
    %s165 = scalar_lea.vmem [#allocation0], 65
    %v166 = vld [vmem:[%s165] ss:$8 sm:$0xf0]
    %vm167 = vcmask 1047556
    %v168 = vsel %vm167, %v166, %v164
    %169 = vrot.lane.b32.xlu0 %v168, 18
    %v170 = vpop.permute.xlu0 %169
    %vm171 = vcmask 294032
    %s172 = scalar_lea.vmem %s1, 8
    %173 = vst.msk [vmem:[%s172] sm:$0xff] %vm171, %v170
    %s174 = scalar_lea.vmem [#allocation0], 129
    %s175 = smov 3
    %v176 = vld [vmem:[%s174] ss:$8 sm:%s175]
    %177 = vrot.lane.b32.xlu0 %v176, 18
    %v178 = vpop.permute.xlu0 %177
    %vm179 = vcmask 294032
    %s180 = scalar_lea.vmem %s1, 16
    %181 = vst.msk [vmem:[%s180] sm:$0x3] %vm179, %v178

// kernel: mae_forward.3
$region0: #{mae_forward.3}
  #allocation0 [shape = 'u32[]', space=smem, size = 0x4, offset = 0x4, fixed_abs, tag = 'smem constant byte address 0x4 - core index']
  #allocation1 [shape = 'u32[72,128]{1,0:T(1,128)}', space=vmem, size = 0x9000, scoped, tag = 'internal scratch']
  %s0 = inlined_call_operand.vmem [shape: f32[16,3], index: 0, kind: input, shape index: {}]
  %s1 = inlined_call_operand.vmem [shape: f32[3,64], index: 1, kind: input, shape index: {}]
  %s2 = inlined_call_operand.vmem [shape: f32[1,64], index: 2, kind: input, shape index: {}]
  %s3 = inlined_call_operand.vmem [shape: f32[64,64], index: 3, kind: input, shape index: {}]
  %s4 = inlined_call_operand.vmem [shape: f32[1,64], index: 4, kind: input, shape index: {}]
  %s5 = inlined_call_operand.vmem [shape: f32[16,64], index: 5, kind: output, shape index: {}]
  %s6 = sld [smem:[#allocation0]]
  $region30: #{mae_forward.3} parent=0
    _
  %s8 = ssub.s32 1, %s6
  %s9 = scalar_select 0, %s8, %s6
  // Predicated region
  $region2: #{mae_forward.3} parent=0 // pred_check
    _
  $region3: #{mae_forward.3} parent=0 // pred_check_branch
    %11 = sbr.rel (0) target = $region5
  $region4: #{mae_forward.3} parent=0 // pred_region
    _
  $region5: #{mae_forward.3} parent=0 // pred_fallthru
    _
  // Predicated region
  $region6: #{mae_forward.3} parent=0 // pred_check
    _
  $region7: #{mae_forward.3} parent=0 // pred_check_branch
    %13 = sbr.rel (0) target = $region9
  $region8: #{mae_forward.3} parent=0 // pred_region
    _
  $region9: #{mae_forward.3} parent=0 // pred_fallthru
    _
  // Predicated region
  $region10: #{mae_forward.3} parent=0 // pred_check
    _
  $region11: #{mae_forward.3} parent=0 // pred_check_branch
    %15 = sbr.rel (0) target = $region13
  $region12: #{mae_forward.3} parent=0 // pred_region
    _
  $region13: #{mae_forward.3} parent=0 // pred_fallthru
    _
  // Predicated region
  $region14: #{mae_forward.3} parent=0 // pred_check
    _
  $region15: #{mae_forward.3} parent=0 // pred_check_branch
    %17 = sbr.rel (0) target = $region17
  $region16: #{mae_forward.3} parent=0 // pred_region
    _
  $region17: #{mae_forward.3} parent=0 // pred_fallthru
    _
  // Predicated region
  $region18: #{mae_forward.3} parent=0 // pred_check
    _
  $region19: #{mae_forward.3} parent=0 // pred_check_branch
    %19 = sbr.rel (0) target = $region21
  $region20: #{mae_forward.3} parent=0 // pred_region
    _
  $region21: #{mae_forward.3} parent=0 // pred_fallthru
    _
  %v20 = vld [vmem:[%s0] sm:$0xff]
  %v21 = vld [vmem:[%s0 + $0x8] sm:$0xff]
  %v22 = vld [vmem:[%s1] sm:$0x7]
  %v23 = vld [vmem:[%s2] sm:$0x1]
  %v25 = vperm.slane %v23, 0
  %vm27 = vcmask 23552
  %v29 = vsel %vm27, %v20, 0
  %v32 = vsel %vm27, %v21, 0
  %vm34 = vcmask 1042432
  %v36 = vsel %vm34, %v22, 0
  %38 = vmatpush.msra.mxu0 0.0
  %39 = vmatpush.msra.mxu0 0.0
  %40 = vmatpush.msra.mxu0 0.0
  %41 = vmatpush.msra.mxu0 0.0
  %42 = vmatpush.msra.mxu0 0.0
  %43 = vmatpush.msra.mxu0 0.0
  %44 = vmatpush.msra.mxu0 0.0
  %45 = vmatpush.msra.mxu0 0.0
  %46 = vmatpush.msra.mxu0 0.0
  %47 = vmatpush.msra.mxu0 0.0
  %48 = vmatpush.msra.mxu0 0.0
  %49 = vmatpush.msra.mxu0 0.0
  %50 = vmatpush.msra.mxu0 0.0
  %51 = vmatpush.msra.mxu0 0.0
  %52 = vmatpush.msra.mxu0 0.0
  %53 = vmatpush.msra.mxu0 %v36
  %54 = vmatmul.f32.gmra.mxu0 %v29
  %v55 = vpop.f32.mrf.mxu0
  %v56 = vadd.f32 %v25, %v55
  %57 = vmatmul.f32.gmra.mxu0 %v32
  %v58 = vpop.f32.mrf.mxu0
  %v59 = vadd.f32 %v25, %v58
  %60 = vdwg.mxu0
  %v61 = vmul.f32 %v56, 0.5
  %v62 = vmul.f32 %v59, 0.5
  %v63 = vmul.f32 %v56, 0.044715
  %v64 = vmul.f32 %v59, 0.044715
  %v65 = vmul.f32 %v63, %v56
  %v66 = vmul.f32 %v64, %v59
  %v67 = vmul.f32 %v65, %v56
  %v68 = vmul.f32 %v66, %v59
  %v69 = vadd.f32 %v56, %v67
  %v70 = vadd.f32 %v59, %v68
  %v71 = vmul.f32 %v69, 0.7978846
  %v72 = vmul.f32 %v70, 0.7978846
  %v73 = vtanh.pop %v71
  %v74 = vtanh.pop %v72
  %v75 = vadd.f32 %v73, 1.0
  %v76 = vadd.f32 %v74, 1.0
  %v77 = vmul.f32 %v61, %v75
  %v78 = vmul.f32 %v62, %v76
  %v79 = vld [vmem:[%s3] sm:$0xff]
  %v80 = vld [vmem:[%s3 + $0x8] sm:$0xff]
  %v81 = vld [vmem:[%s3 + $0x10] sm:$0xff]
  %v82 = vld [vmem:[%s3 + $0x18] sm:$0xff]
  %v83 = vld [vmem:[%s3 + $0x20] sm:$0xff]
  %v84 = vld [vmem:[%s3 + $0x28] sm:$0xff]
  %v85 = vld [vmem:[%s3 + $0x30] sm:$0xff]
  %v86 = vld [vmem:[%s3 + $0x38] sm:$0xff]
  %v87 = vld [vmem:[%s4] sm:$0x1]
  %v89 = vperm.slane %v87, 0
  %vm91 = vcmask 523264
  %v93 = vsel %vm91, %v77, 0
  %v96 = vsel %vm91, %v78, 0
  %98 = vmatpush.msra.mxu0 0.0
  %99 = vmatpush.msra.mxu0 0.0
  %100 = vmatpush.msra.mxu0 0.0
  %101 = vmatpush.msra.mxu0 0.0
  %102 = vmatpush.msra.mxu0 0.0
  %103 = vmatpush.msra.mxu0 0.0
  %104 = vmatpush.msra.mxu0 0.0
  %105 = vmatpush.msra.mxu0 0.0
  %106 = vmatpush.msra.mxu0 %v86
  %107 = vmatpush.msra.mxu0 %v85
  %108 = vmatpush.msra.mxu0 %v84
  %109 = vmatpush.msra.mxu0 %v83
  %110 = vmatpush.msra.mxu0 %v82
  %111 = vmatpush.msra.mxu0 %v81
  %112 = vmatpush.msra.mxu0 %v80
  %113 = vmatpush.msra.mxu0 %v79
  %114 = vmatmul.f32.gmra.mxu0 %v93
  %v115 = vpop.f32.mrf.mxu0
  %v116 = vadd.f32 %v89, %v115
  %117 = vmatmul.f32.gmra.mxu0 %v96
  %v118 = vpop.f32.mrf.mxu0
  %v119 = vadd.f32 %v89, %v118
  %120 = vdwg.mxu0
  %121 = vst.msk [vmem:[%s5] sm:$0xff] %vm91, %v116
  %122 = vst.msk [vmem:[%s5 + $0x8] sm:$0xff] %vm91, %v119
  // Predicated region
  $region22: #{mae_forward.3} parent=0 // pred_check
    _
  $region23: #{mae_forward.3} parent=0 // pred_check_branch
    %124 = sbr.rel (0) target = $region25
  $region24: #{mae_forward.3} parent=0 // pred_region
    _
  $region25: #{mae_forward.3} parent=0 // pred_fallthru
    _
  // Predicated region
  $region26: #{mae_forward.3} parent=0 // pred_check
    _
  $region27: #{mae_forward.3} parent=0 // pred_check_branch
    %126 = sbr.rel (0) target = $region29
  $region28: #{mae_forward.3} parent=0 // pred_region
    _
  $region29: #{mae_forward.3} parent=0 // pred_fallthru
    _

// kernel: mae_forward.4
$region0: #{mae_forward.4}
  #allocation0 [shape = 'u32[]', space=smem, size = 0x4, offset = 0x4, fixed_abs, tag = 'smem constant byte address 0x4 - core index']
  #allocation1 [shape = 'u32[72,128]{1,0:T(1,128)}', space=vmem, size = 0x9000, scoped, tag = 'internal scratch']
  %s0 = inlined_call_operand.vmem [shape: f32[6,32], index: 0, kind: input, shape index: {}]
  %s1 = inlined_call_operand.vmem [shape: f32[6,24], index: 1, kind: input, shape index: {}]
  %s2 = inlined_call_operand.vmem [shape: f32[24,32], index: 2, kind: input, shape index: {}]
  %s3 = inlined_call_operand.vmem [shape: f32[2,32,384], index: 3, kind: input, shape index: {}]
  %s4 = inlined_call_operand.vmem [shape: f32[2,1,416], index: 4, kind: input, shape index: {}]
  %s5 = inlined_call_operand.vmem [shape: f32[32,32], index: 5, kind: input, shape index: {}]
  %s6 = inlined_call_operand.vmem [shape: f32[1,96], index: 6, kind: input, shape index: {}]
  %s7 = inlined_call_operand.vmem [shape: f32[6,32], index: 7, kind: output, shape index: {}]
  %s8 = sld [smem:[#allocation0]]
  $region38: #{mae_forward.4} parent=0
    _
  %s10 = ssub.s32 1, %s8
  %s11 = scalar_select 0, %s10, %s8
  // Predicated region
  $region2: #{mae_forward.4} parent=0 // pred_check
    _
  $region3: #{mae_forward.4} parent=0 // pred_check_branch
    %13 = sbr.rel (0) target = $region5
  $region4: #{mae_forward.4} parent=0 // pred_region
    _
  $region5: #{mae_forward.4} parent=0 // pred_fallthru
    _
  // Predicated region
  $region6: #{mae_forward.4} parent=0 // pred_check
    _
  $region7: #{mae_forward.4} parent=0 // pred_check_branch
    %15 = sbr.rel (0) target = $region9
  $region8: #{mae_forward.4} parent=0 // pred_region
    _
  $region9: #{mae_forward.4} parent=0 // pred_fallthru
    _
  // Predicated region
  $region10: #{mae_forward.4} parent=0 // pred_check
    _
  $region11: #{mae_forward.4} parent=0 // pred_check_branch
    %17 = sbr.rel (0) target = $region13
  $region12: #{mae_forward.4} parent=0 // pred_region
    _
  $region13: #{mae_forward.4} parent=0 // pred_fallthru
    _
  // Predicated region
  $region14: #{mae_forward.4} parent=0 // pred_check
    _
  $region15: #{mae_forward.4} parent=0 // pred_check_branch
    %19 = sbr.rel (0) target = $region17
  $region16: #{mae_forward.4} parent=0 // pred_region
    _
  $region17: #{mae_forward.4} parent=0 // pred_fallthru
    _
  // Predicated region
  $region18: #{mae_forward.4} parent=0 // pred_check
    _
  $region19: #{mae_forward.4} parent=0 // pred_check_branch
    %21 = sbr.rel (0) target = $region21
  $region20: #{mae_forward.4} parent=0 // pred_region
    _
  $region21: #{mae_forward.4} parent=0 // pred_fallthru
    _
  // Predicated region
  $region22: #{mae_forward.4} parent=0 // pred_check
    _
  $region23: #{mae_forward.4} parent=0 // pred_check_branch
    %23 = sbr.rel (0) target = $region25
  $region24: #{mae_forward.4} parent=0 // pred_region
    _
  $region25: #{mae_forward.4} parent=0 // pred_fallthru
    _
  // Predicated region
  $region26: #{mae_forward.4} parent=0 // pred_check
    _
  $region27: #{mae_forward.4} parent=0 // pred_check_branch
    %25 = sbr.rel (0) target = $region29
  $region28: #{mae_forward.4} parent=0 // pred_region
    _
  $region29: #{mae_forward.4} parent=0 // pred_fallthru
    _
  %v26 = vld [vmem:[%s0] sm:$0x3f]
  %v27 = vld [vmem:[%s1] sm:$0x3f]
  %v28 = vld [vmem:[%s2] sm:$0xff]
  %v29 = vld [vmem:[%s2 + $0x8] sm:$0xff]
  %v30 = vld [vmem:[%s2 + $0x10] sm:$0xff]
  %v31 = vld [vmem:[%s3] sm:$0xff]
  %v32 = vld [vmem:[%s3 + $0x18] sm:$0xff]
  %v33 = vld [vmem:[%s3 + $0x30] sm:$0xff]
  %v34 = vld [vmem:[%s3 + $0x48] sm:$0xff]
  %v35 = vld [vmem:[%s3 + $0x8] sm:$0xff]
  %v36 = vld [vmem:[%s3 + $0x20] sm:$0xff]
  %v37 = vld [vmem:[%s3 + $0x38] sm:$0xff]
  %v38 = vld [vmem:[%s3 + $0x50] sm:$0xff]
  %v39 = vld [vmem:[%s3 + $0x10] sm:$0xff]
  %v40 = vld [vmem:[%s3 + $0x28] sm:$0xff]
  %v41 = vld [vmem:[%s3 + $0x40] sm:$0xff]
  %v42 = vld [vmem:[%s3 + $0x58] sm:$0xff]
  %v43 = vld [vmem:[%s4] sm:$0x1]
  %v44 = vld [vmem:[%s4] sm:$0x3]
  %v45 = vld [vmem:[%s4 + $0x1] sm:$0x1]
  %v46 = vld [vmem:[%s4 + $0x2] sm:$0x1]
  %v47 = vld [vmem:[%s4 + $0x3] sm:$0x1]
  %vm48 = vcmask 259072
  %v49 = vsel %vm48, %v26, 0.0
  %50 = vadd.xlane.f32.xlu0 %v49
  %v51 = vpop.xlane.xlu0 %50
  %v52 = vrcp.pop 32.0
  %v53 = vmul.f32 32.0, %v52
  %v54 = vsub.f32 1.0, %v53
  %v55 = vmul.f32 %v52, %v54
  %v56 = vadd.f32 %v52, %v55
  %vm57 = vweird.f32 %v52
  %v58 = vsel %vm57, %v52, %v56
  %v59 = vmul.f32 %v51, %v58
  %v60 = vsub.f32 %v26, %v59
  %v61 = vmul.f32 %v60, %v60
  %v62 = vsel %vm48, %v61, 0.0
  %63 = vadd.xlane.f32.xlu0 %v62
  %v64 = vpop.xlane.xlu0 %63
  %v65 = vmul.f32 %v64, %v58
  %v66 = vadd.f32 %v65, 1e-05
  %v67 = vrsqrt.pop %v66
  %v68 = vmul.f32 %v67, %v66
  %v69 = vmul.f32 %v68, %v67
  %v70 = vmul.f32 0.5, %v69
  %v71 = vsub.f32 1.5, %v70
  %v72 = vmul.f32 %v67, %v71
  %vm73 = vweird.f32 %v66
  %vm74 = vweird.f32 %v67
  %vm75 = vmor %vm73, %vm74
  %v76 = vsel %vm75, %v67, %v72
  %v77 = vmul.f32 %v60, %v76
  %v79 = vperm.slane %v43, 0
  %v81 = vmul.f32 %v77, %v79
  %82 = vrot.lane.b32.xlu0 %v79, 96
  %v83 = vpop.permute.xlu0 %82
  %v85 = vadd.f32 %v81, %v83
  %v87 = vperm.slane %v44, 0
  %v88 = vperm.slane %v44, 1
  %89 = vrot.lane.b32.xlu0 %v87, 64
  %v90 = vpop.permute.xlu0 %89
  %91 = vrot.lane.b32.xlu0 %v88, 64
  %v92 = vpop.permute.xlu0 %91
  %vm93 = vcmask 523264
  %v94 = vsel %vm93, %v90, %v92
  %vm96 = vcmask 261120
  %v98 = vsel %vm96, %v85, 0
  %100 = vmatpush.msra.mxu0 0.0
  %101 = vmatpush.msra.mxu0 0.0
  %102 = vmatpush.msra.mxu0 0.0
  %103 = vmatpush.msra.mxu0 0.0
  %104 = vmatpush.msra.mxu0 0.0
  %105 = vmatpush.msra.mxu0 0.0
  %106 = vmatpush.msra.mxu0 0.0
  %107 = vmatpush.msra.mxu0 0.0
  %108 = vmatpush.msra.mxu0 0.0
  %109 = vmatpush.msra.mxu0 0.0
  %110 = vmatpush.msra.mxu0 0.0
  %111 = vmatpush.msra.mxu0 0.0
  %112 = vmatpush.msra.mxu0 %v34
  %113 = vmatpush.msra.mxu0 %v33
  %114 = vmatpush.msra.mxu0 %v32
  %115 = vmatpush.msra.mxu0 %v31
  %116 = vmatmul.f32.gmra.mxu0 %v98
  %v117 = vpop.f32.mrf.mxu0
  %v118 = vadd.f32 %v94, %v117
  %119 = vdwg.mxu0
  %v121 = vrot.slane %v118, 2
  %v123 = vrot.slane %v118, 4
  %v125 = vrot.slane %v118, 6
  %vm127 = vcmask 1045504
  %v128 = vsel %vm127, %v118, %v121
  %vm129 = vcmask 1043456
  %v130 = vsel %vm129, %v121, %v123
  %vm131 = vcmask 1041408
  %v132 = vsel %vm131, %v123, %v125
  %136 = vrot.lane.b32.xlu0 %v28, 32
  %v137 = vpop.permute.xlu0 %136
  %138 = vrot.lane.b32.xlu0 %v29, 32
  %v139 = vpop.permute.xlu0 %138
  %140 = vrot.lane.b32.xlu0 %v30, 32
  %v141 = vpop.permute.xlu0 %140
  %v145 = vmul.f32 %v128, %v137
  %v146 = vmul.f32 %v130, %v139
  %v147 = vmul.f32 %v132, %v141
  %148 = vrot.lane.b32.xlu0 %v28, 64
  %v149 = vpop.permute.xlu0 %148
  %150 = vrot.lane.b32.xlu0 %v29, 64
  %v151 = vpop.permute.xlu0 %150
  %152 = vrot.lane.b32.xlu0 %v30, 64
  %v153 = vpop.permute.xlu0 %152
  %v157 = vmul.f32 %v128, %v149
  %v158 = vmul.f32 %v130, %v151
  %v159 = vmul.f32 %v132, %v153
  %163 = vrot.lane.b32.xlu0 %v145, 96
  %v164 = vpop.permute.xlu0 %163
  %165 = vrot.lane.b32.xlu0 %v146, 96
  %v166 = vpop.permute.xlu0 %165
  %167 = vrot.lane.b32.xlu0 %v147, 96
  %v168 = vpop.permute.xlu0 %167
  %v169 = vsel %vm96, %v118, 0
  %v171 = vsel %vm96, %v164, 0
  %v173 = vsel %vm96, %v166, 0
  %v175 = vsel %vm96, %v168, 0
  %177 = vmatpush.xpose.msra.mxu0 0.0
  %178 = vmatpush.xpose.msra.mxu0 0.0
  %179 = vmatpush.xpose.msra.mxu0 0.0
  %180 = vmatpush.xpose.msra.mxu0 0.0
  %181 = vmatpush.xpose.msra.mxu0 0.0
  %182 = vmatpush.xpose.msra.mxu0 0.0
  %183 = vmatpush.xpose.msra.mxu0 0.0
  %184 = vmatpush.xpose.msra.mxu0 0.0
  %185 = vmatpush.xpose.msra.mxu0 0.0
  %186 = vmatpush.xpose.msra.mxu0 0.0
  %187 = vmatpush.xpose.msra.mxu0 0.0
  %188 = vmatpush.xpose.msra.mxu0 0.0
  %189 = vmatpush.xpose.msra.mxu0 0.0
  %190 = vmatpush.xpose.msra.mxu0 %v175
  %191 = vmatpush.xpose.msra.mxu0 %v173
  %192 = vmatpush.xpose.msra.mxu0 %v171
  %193 = vmatmul.f32.gmra.mxu0 %v169
  %v194 = vpop.f32.mrf.mxu0
  %v195 = vadd.f32 0.0, %v194
  %196 = vdwg.mxu0
  %v197 = vmul.f32 %v195, 0.35355338
  %v198 = vadd.f32 %v197, %v27
  %vm199 = vcmask 193536
  %v200 = vsel %vm199, %v198, -inf
  %201 = vmax.xlane.f32.xlu0 %v200
  %v202 = vpop.xlane.xlu0 %201
  %v203 = vsub.f32 %v198, %v202
  %v204 = vmul.f32 %v203, 1.442695
  %v205 = vpow.pop %v204
  %209 = vrot.lane.b32.xlu0 %v157, 64
  %v210 = vpop.permute.xlu0 %209
  %211 = vrot.lane.b32.xlu0 %v158, 64
  %v212 = vpop.permute.xlu0 %211
  %213 = vrot.lane.b32.xlu0 %v159, 64
  %v214 = vpop.permute.xlu0 %213
  %vm218 = vcmask 195584
  %v220 = vsel %vm218, %v205, 0
  %222 = vmatpush.msra.mxu0 0.0
  %223 = vmatpush.msra.mxu0 0.0
  %224 = vmatpush.msra.mxu0 0.0
  %225 = vmatpush.msra.mxu0 0.0
  %226 = vmatpush.msra.mxu0 0.0
  %227 = vmatpush.msra.mxu0 0.0
  %228 = vmatpush.msra.mxu0 0.0
  %229 = vmatpush.msra.mxu0 0.0
  %230 = vmatpush.msra.mxu0 0.0
  %231 = vmatpush.msra.mxu0 0.0
  %232 = vmatpush.msra.mxu0 0.0
  %233 = vmatpush.msra.mxu0 0.0
  %234 = vmatpush.msra.mxu0 0.0
  %235 = vmatpush.msra.mxu0 %v214
  %236 = vmatpush.msra.mxu0 %v212
  %237 = vmatpush.msra.mxu0 %v210
  %238 = vmatmul.f32.gmra.mxu0 %v220
  %v239 = vpop.f32.mrf.mxu0
  %v240 = vadd.f32 0.0, %v239
  %241 = vdwg.mxu0
  %242 = vmatpush.msra.mxu0 0.0
  %243 = vmatpush.msra.mxu0 0.0
  %244 = vmatpush.msra.mxu0 0.0
  %245 = vmatpush.msra.mxu0 0.0
  %246 = vmatpush.msra.mxu0 0.0
  %247 = vmatpush.msra.mxu0 0.0
  %248 = vmatpush.msra.mxu0 0.0
  %249 = vmatpush.msra.mxu0 0.0
  %250 = vmatpush.msra.mxu0 0.0
  %251 = vmatpush.msra.mxu0 0.0
  %252 = vmatpush.msra.mxu0 0.0
  %253 = vmatpush.msra.mxu0 0.0
  %254 = vmatpush.msra.mxu0 0.0
  %255 = vmatpush.msra.mxu0 %v30
  %256 = vmatpush.msra.mxu0 %v29
  %257 = vmatpush.msra.mxu0 %v28
  %258 = vmatmul.f32.gmra.mxu0 %v220
  %v259 = vpop.f32.mrf.mxu0
  %v260 = vadd.f32 0.0, %v259
  %261 = vdwg.mxu0
  %v262 = vrcp.pop %v260
  %v263 = vmul.f32 %v240, %v262
  %268 = vrot.lane.b32.xlu0 %v31, 32
  %v269 = vpop.permute.xlu0 %268
  %270 = vrot.lane.b32.xlu0 %v32, 32
  %v271 = vpop.permute.xlu0 %270
  %272 = vrot.lane.b32.xlu0 %v33, 32
  %v273 = vpop.permute.xlu0 %272
  %274 = vrot.lane.b32.xlu0 %v34, 32
  %v275 = vpop.permute.xlu0 %274
  %v281 = vsel %vm96, %v263, 0
  %283 = vmatpush.msra.mxu0 0.0
  %284 = vmatpush.msra.mxu0 0.0
  %285 = vmatpush.msra.mxu0 0.0
  %286 = vmatpush.msra.mxu0 0.0
  %287 = vmatpush.msra.mxu0 0.0
  %288 = vmatpush.msra.mxu0 0.0
  %289 = vmatpush.msra.mxu0 0.0
  %290 = vmatpush.msra.mxu0 0.0
  %291 = vmatpush.msra.mxu0 0.0
  %292 = vmatpush.msra.mxu0 0.0
  %293 = vmatpush.msra.mxu0 0.0
  %294 = vmatpush.msra.mxu0 0.0
  %295 = vmatpush.msra.mxu0 %v275
  %296 = vmatpush.msra.mxu0 %v273
  %297 = vmatpush.msra.mxu0 %v271
  %298 = vmatpush.msra.mxu0 %v269
  %299 = vmatmul.f32.gmra.mxu0 %v281
  %v300 = vpop.f32.mrf.mxu0
  %v301 = vadd.f32 0.0, %v300
  %302 = vdwg.mxu0
  %v303 = vadd.f32 %v26, %v301
  %v305 = vperm.slane %v45, 0
  %306 = vrot.lane.b32.xlu0 %v305, 96
  %v307 = vpop.permute.xlu0 %306
  %v309 = vadd.f32 %v303, %v307
  %v310 = vsel %vm48, %v309, 0.0
  %311 = vadd.xlane.f32.xlu0 %v310
  %v312 = vpop.xlane.xlu0 %311
  %v313 = vmul.f32 %v312, %v58
  %v314 = vsub.f32 %v309, %v313
  %v315 = vmul.f32 %v314, %v314
  %v316 = vsel %vm48, %v315, 0.0
  %317 = vadd.xlane.f32.xlu0 %v316
  %v318 = vpop.xlane.xlu0 %317
  %v319 = vmul.f32 %v318, %v58
  %v320 = vadd.f32 %v319, 1e-05
  %v321 = vrsqrt.pop %v320
  %v322 = vmul.f32 %v321, %v320
  %v323 = vmul.f32 %v322, %v321
  %v324 = vmul.f32 0.5, %v323
  %v325 = vsub.f32 1.5, %v324
  %v326 = vmul.f32 %v321, %v325
  %vm327 = vweird.f32 %v320
  %vm328 = vweird.f32 %v321
  %vm329 = vmor %vm327, %vm328
  %v330 = vsel %vm329, %v321, %v326
  %v331 = vmul.f32 %v314, %v330
  %332 = vrot.lane.b32.xlu0 %v305, 64
  %v333 = vpop.permute.xlu0 %332
  %v335 = vmul.f32 %v331, %v333
  %336 = vrot.lane.b32.xlu0 %v305, 32
  %v337 = vpop.permute.xlu0 %336
  %v339 = vadd.f32 %v335, %v337
  %v341 = vperm.slane %v46, 0
  %v344 = vsel %vm96, %v339, 0
  %346 = vmatpush.msra.mxu0 0.0
  %347 = vmatpush.msra.mxu0 0.0
  %348 = vmatpush.msra.mxu0 0.0
  %349 = vmatpush.msra.mxu0 0.0
  %350 = vmatpush.msra.mxu0 0.0
  %351 = vmatpush.msra.mxu0 0.0
  %352 = vmatpush.msra.mxu0 0.0
  %353 = vmatpush.msra.mxu0 0.0
  %354 = vmatpush.msra.mxu0 0.0
  %355 = vmatpush.msra.mxu0 0.0
  %356 = vmatpush.msra.mxu0 0.0
  %357 = vmatpush.msra.mxu0 0.0
  %358 = vmatpush.msra.mxu0 %v38
  %359 = vmatpush.msra.mxu0 %v37
  %360 = vmatpush.msra.mxu0 %v36
  %361 = vmatpush.msra.mxu0 %v35
  %362 = vmatmul.f32.gmra.mxu0 %v344
  %v363 = vpop.f32.mrf.mxu0
  %v364 = vadd.f32 %v341, %v363
  %365 = vdwg.mxu0
  %v366 = vmul.f32 %v364, 0.5
  %v367 = vmul.f32 %v364, 0.044715
  %v368 = vmul.f32 %v367, %v364
  %v369 = vmul.f32 %v368, %v364
  %v370 = vadd.f32 %v364, %v369
  %v371 = vmul.f32 %v370, 0.7978846
  %v372 = vtanh.pop %v371
  %v373 = vadd.f32 %v372, 1.0
  %v374 = vmul.f32 %v366, %v373
  %375 = vmatpush.xpose.msra.mxu0 0.0
  %376 = vmatpush.xpose.msra.mxu0 0.0
  %377 = vmatpush.xpose.msra.mxu0 0.0
  %378 = vmatpush.xpose.msra.mxu0 0.0
  %379 = vmatpush.xpose.msra.mxu0 0.0
  %380 = vmatpush.xpose.msra.mxu0 0.0
  %381 = vmatpush.xpose.msra.mxu0 0.0
  %382 = vmatpush.xpose.msra.mxu0 0.0
  %383 = vmatpush.xpose.msra.mxu0 0.0
  %384 = vmatpush.xpose.msra.mxu0 0.0
  %385 = vmatpush.xpose.msra.mxu0 0.0
  %386 = vmatpush.xpose.msra.mxu0 0.0
  %387 = vmatpush.xpose.msra.mxu0 %v42
  %388 = vmatpush.xpose.msra.mxu0 %v41
  %389 = vmatpush.xpose.msra.mxu0 %v40
  %390 = vmatpush.xpose.msra.mxu0 %v39
  %391 = vmatmul.f32.gmra.mxu0 %v374
  %v392 = vpop.f32.mrf.mxu0
  %v393 = vadd.f32 0.0, %v392
  %394 = vdwg.mxu0
  %v395 = vadd.f32 %v309, %v393
  %v397 = vperm.slane %v47, 0
  %v399 = vadd.f32 %v395, %v397
  %s400 = scalar_lea.vmem %s3, 96
  %v401 = vld [vmem:[%s400] sm:$0xff]
  %v402 = vld [vmem:[%s400 + $0x18] sm:$0xff]
  %v403 = vld [vmem:[%s400 + $0x30] sm:$0xff]
  %v404 = vld [vmem:[%s400 + $0x48] sm:$0xff]
  %v405 = vld [vmem:[%s400 + $0x8] sm:$0xff]
  %v406 = vld [vmem:[%s400 + $0x20] sm:$0xff]
  %v407 = vld [vmem:[%s400 + $0x38] sm:$0xff]
  %v408 = vld [vmem:[%s400 + $0x50] sm:$0xff]
  %v409 = vld [vmem:[%s400 + $0x10] sm:$0xff]
  %v410 = vld [vmem:[%s400 + $0x28] sm:$0xff]
  %v411 = vld [vmem:[%s400 + $0x40] sm:$0xff]
  %v412 = vld [vmem:[%s400 + $0x58] sm:$0xff]
  %s413 = scalar_lea.vmem %s4, 4
  %v414 = vld [vmem:[%s413] sm:$0x1]
  %v415 = vld [vmem:[%s413] sm:$0x3]
  %v416 = vld [vmem:[%s413 + $0x1] sm:$0x1]
  %v417 = vld [vmem:[%s413 + $0x2] sm:$0x1]
  %v418 = vld [vmem:[%s413 + $0x3] sm:$0x1]
  %v419 = vsel %vm48, %v399, 0.0
  %420 = vadd.xlane.f32.xlu0 %v419
  %v421 = vpop.xlane.xlu0 %420
  %v422 = vmul.f32 %v421, %v58
  %v423 = vsub.f32 %v399, %v422
  %v424 = vmul.f32 %v423, %v423
  %v425 = vsel %vm48, %v424, 0.0
  %426 = vadd.xlane.f32.xlu0 %v425
  %v427 = vpop.xlane.xlu0 %426
  %v428 = vmul.f32 %v427, %v58
  %v429 = vadd.f32 %v428, 1e-05
  %v430 = vrsqrt.pop %v429
  %v431 = vmul.f32 %v430, %v429
  %v432 = vmul.f32 %v431, %v430
  %v433 = vmul.f32 0.5, %v432
  %v434 = vsub.f32 1.5, %v433
  %v435 = vmul.f32 %v430, %v434
  %vm436 = vweird.f32 %v429
  %vm437 = vweird.f32 %v430
  %vm438 = vmor %vm436, %vm437
  %v439 = vsel %vm438, %v430, %v435
  %v440 = vmul.f32 %v423, %v439
  %v442 = vperm.slane %v414, 0
  %v444 = vmul.f32 %v440, %v442
  %445 = vrot.lane.b32.xlu0 %v442, 96
  %v446 = vpop.permute.xlu0 %445
  %v448 = vadd.f32 %v444, %v446
  %v450 = vperm.slane %v415, 0
  %v451 = vperm.slane %v415, 1
  %452 = vrot.lane.b32.xlu0 %v450, 64
  %v453 = vpop.permute.xlu0 %452
  %454 = vrot.lane.b32.xlu0 %v451, 64
  %v455 = vpop.permute.xlu0 %454
  %v456 = vsel %vm93, %v453, %v455
  %v459 = vsel %vm96, %v448, 0
  %461 = vmatpush.msra.mxu0 0.0
  %462 = vmatpush.msra.mxu0 0.0
  %463 = vmatpush.msra.mxu0 0.0
  %464 = vmatpush.msra.mxu0 0.0
  %465 = vmatpush.msra.mxu0 0.0
  %466 = vmatpush.msra.mxu0 0.0
  %467 = vmatpush.msra.mxu0 0.0
  %468 = vmatpush.msra.mxu0 0.0
  %469 = vmatpush.msra.mxu0 0.0
  %470 = vmatpush.msra.mxu0 0.0
  %471 = vmatpush.msra.mxu0 0.0
  %472 = vmatpush.msra.mxu0 0.0
  %473 = vmatpush.msra.mxu0 %v404
  %474 = vmatpush.msra.mxu0 %v403
  %475 = vmatpush.msra.mxu0 %v402
  %476 = vmatpush.msra.mxu0 %v401
  %477 = vmatmul.f32.gmra.mxu0 %v459
  %v478 = vpop.f32.mrf.mxu0
  %v479 = vadd.f32 %v456, %v478
  %480 = vdwg.mxu0
  %v482 = vrot.slane %v479, 2
  %v484 = vrot.slane %v479, 4
  %v486 = vrot.slane %v479, 6
  %v488 = vsel %vm127, %v479, %v482
  %v489 = vsel %vm129, %v482, %v484
  %v490 = vsel %vm131, %v484, %v486
  %v491 = vmul.f32 %v488, %v137
  %v492 = vmul.f32 %v489, %v139
  %v493 = vmul.f32 %v490, %v141
  %v494 = vmul.f32 %v488, %v149
  %v495 = vmul.f32 %v489, %v151
  %v496 = vmul.f32 %v490, %v153
  %500 = vrot.lane.b32.xlu0 %v491, 96
  %v501 = vpop.permute.xlu0 %500
  %502 = vrot.lane.b32.xlu0 %v492, 96
  %v503 = vpop.permute.xlu0 %502
  %504 = vrot.lane.b32.xlu0 %v493, 96
  %v505 = vpop.permute.xlu0 %504
  %v506 = vsel %vm96, %v479, 0
  %v508 = vsel %vm96, %v501, 0
  %v510 = vsel %vm96, %v503, 0
  %v512 = vsel %vm96, %v505, 0
  %514 = vmatpush.xpose.msra.mxu0 0.0
  %515 = vmatpush.xpose.msra.mxu0 0.0
  %516 = vmatpush.xpose.msra.mxu0 0.0
  %517 = vmatpush.xpose.msra.mxu0 0.0
  %518 = vmatpush.xpose.msra.mxu0 0.0
  %519 = vmatpush.xpose.msra.mxu0 0.0
  %520 = vmatpush.xpose.msra.mxu0 0.0
  %521 = vmatpush.xpose.msra.mxu0 0.0
  %522 = vmatpush.xpose.msra.mxu0 0.0
  %523 = vmatpush.xpose.msra.mxu0 0.0
  %524 = vmatpush.xpose.msra.mxu0 0.0
  %525 = vmatpush.xpose.msra.mxu0 0.0
  %526 = vmatpush.xpose.msra.mxu0 0.0
  %527 = vmatpush.xpose.msra.mxu0 %v512
  %528 = vmatpush.xpose.msra.mxu0 %v510
  %529 = vmatpush.xpose.msra.mxu0 %v508
  %530 = vmatmul.f32.gmra.mxu0 %v506
  %v531 = vpop.f32.mrf.mxu0
  %v532 = vadd.f32 0.0, %v531
  %533 = vdwg.mxu0
  %v534 = vmul.f32 %v532, 0.35355338
  %v535 = vadd.f32 %v534, %v27
  %v536 = vsel %vm199, %v535, -inf
  %537 = vmax.xlane.f32.xlu0 %v536
  %v538 = vpop.xlane.xlu0 %537
  %v539 = vsub.f32 %v535, %v538
  %v540 = vmul.f32 %v539, 1.442695
  %v541 = vpow.pop %v540
  %545 = vrot.lane.b32.xlu0 %v494, 64
  %v546 = vpop.permute.xlu0 %545
  %547 = vrot.lane.b32.xlu0 %v495, 64
  %v548 = vpop.permute.xlu0 %547
  %549 = vrot.lane.b32.xlu0 %v496, 64
  %v550 = vpop.permute.xlu0 %549
  %v555 = vsel %vm218, %v541, 0
  %557 = vmatpush.msra.mxu0 0.0
  %558 = vmatpush.msra.mxu0 0.0
  %559 = vmatpush.msra.mxu0 0.0
  %560 = vmatpush.msra.mxu0 0.0
  %561 = vmatpush.msra.mxu0 0.0
  %562 = vmatpush.msra.mxu0 0.0
  %563 = vmatpush.msra.mxu0 0.0
  %564 = vmatpush.msra.mxu0 0.0
  %565 = vmatpush.msra.mxu0 0.0
  %566 = vmatpush.msra.mxu0 0.0
  %567 = vmatpush.msra.mxu0 0.0
  %568 = vmatpush.msra.mxu0 0.0
  %569 = vmatpush.msra.mxu0 0.0
  %570 = vmatpush.msra.mxu0 %v550
  %571 = vmatpush.msra.mxu0 %v548
  %572 = vmatpush.msra.mxu0 %v546
  %573 = vmatmul.f32.gmra.mxu0 %v555
  %v574 = vpop.f32.mrf.mxu0
  %v575 = vadd.f32 0.0, %v574
  %576 = vdwg.mxu0
  %577 = vmatpush.msra.mxu0 0.0
  %578 = vmatpush.msra.mxu0 0.0
  %579 = vmatpush.msra.mxu0 0.0
  %580 = vmatpush.msra.mxu0 0.0
  %581 = vmatpush.msra.mxu0 0.0
  %582 = vmatpush.msra.mxu0 0.0
  %583 = vmatpush.msra.mxu0 0.0
  %584 = vmatpush.msra.mxu0 0.0
  %585 = vmatpush.msra.mxu0 0.0
  %586 = vmatpush.msra.mxu0 0.0
  %587 = vmatpush.msra.mxu0 0.0
  %588 = vmatpush.msra.mxu0 0.0
  %589 = vmatpush.msra.mxu0 0.0
  %590 = vmatpush.msra.mxu0 %v30
  %591 = vmatpush.msra.mxu0 %v29
  %592 = vmatpush.msra.mxu0 %v28
  %593 = vmatmul.f32.gmra.mxu0 %v555
  %v594 = vpop.f32.mrf.mxu0
  %v595 = vadd.f32 0.0, %v594
  %596 = vdwg.mxu0
  %v597 = vrcp.pop %v595
  %v598 = vmul.f32 %v575, %v597
  %603 = vrot.lane.b32.xlu0 %v401, 32
  %v604 = vpop.permute.xlu0 %603
  %605 = vrot.lane.b32.xlu0 %v402, 32
  %v606 = vpop.permute.xlu0 %605
  %607 = vrot.lane.b32.xlu0 %v403, 32
  %v608 = vpop.permute.xlu0 %607
  %609 = vrot.lane.b32.xlu0 %v404, 32
  %v610 = vpop.permute.xlu0 %609
  %v616 = vsel %vm96, %v598, 0
  %618 = vmatpush.msra.mxu0 0.0
  %619 = vmatpush.msra.mxu0 0.0
  %620 = vmatpush.msra.mxu0 0.0
  %621 = vmatpush.msra.mxu0 0.0
  %622 = vmatpush.msra.mxu0 0.0
  %623 = vmatpush.msra.mxu0 0.0
  %624 = vmatpush.msra.mxu0 0.0
  %625 = vmatpush.msra.mxu0 0.0
  %626 = vmatpush.msra.mxu0 0.0
  %627 = vmatpush.msra.mxu0 0.0
  %628 = vmatpush.msra.mxu0 0.0
  %629 = vmatpush.msra.mxu0 0.0
  %630 = vmatpush.msra.mxu0 %v610
  %631 = vmatpush.msra.mxu0 %v608
  %632 = vmatpush.msra.mxu0 %v606
  %633 = vmatpush.msra.mxu0 %v604
  %634 = vmatmul.f32.gmra.mxu0 %v616
  %v635 = vpop.f32.mrf.mxu0
  %v636 = vadd.f32 0.0, %v635
  %637 = vdwg.mxu0
  %v638 = vadd.f32 %v399, %v636
  %v640 = vperm.slane %v416, 0
  %641 = vrot.lane.b32.xlu0 %v640, 96
  %v642 = vpop.permute.xlu0 %641
  %v644 = vadd.f32 %v638, %v642
  %v645 = vsel %vm48, %v644, 0.0
  %646 = vadd.xlane.f32.xlu0 %v645
  %v647 = vpop.xlane.xlu0 %646
  %v648 = vmul.f32 %v647, %v58
  %v649 = vsub.f32 %v644, %v648
  %v650 = vmul.f32 %v649, %v649
  %v651 = vsel %vm48, %v650, 0.0
  %652 = vadd.xlane.f32.xlu0 %v651
  %v653 = vpop.xlane.xlu0 %652
  %v654 = vmul.f32 %v653, %v58
  %v655 = vadd.f32 %v654, 1e-05
  %v656 = vrsqrt.pop %v655
  %v657 = vmul.f32 %v656, %v655
  %v658 = vmul.f32 %v657, %v656
  %v659 = vmul.f32 0.5, %v658
  %v660 = vsub.f32 1.5, %v659
  %v661 = vmul.f32 %v656, %v660
  %vm662 = vweird.f32 %v655
  %vm663 = vweird.f32 %v656
  %vm664 = vmor %vm662, %vm663
  %v665 = vsel %vm664, %v656, %v661
  %v666 = vmul.f32 %v649, %v665
  %667 = vrot.lane.b32.xlu0 %v640, 64
  %v668 = vpop.permute.xlu0 %667
  %v670 = vmul.f32 %v666, %v668
  %671 = vrot.lane.b32.xlu0 %v640, 32
  %v672 = vpop.permute.xlu0 %671
  %v674 = vadd.f32 %v670, %v672
  %v676 = vperm.slane %v417, 0
  %v679 = vsel %vm96, %v674, 0
  %681 = vmatpush.msra.mxu0 0.0
  %682 = vmatpush.msra.mxu0 0.0
  %683 = vmatpush.msra.mxu0 0.0
  %684 = vmatpush.msra.mxu0 0.0
  %685 = vmatpush.msra.mxu0 0.0
  %686 = vmatpush.msra.mxu0 0.0
  %687 = vmatpush.msra.mxu0 0.0
  %688 = vmatpush.msra.mxu0 0.0
  %689 = vmatpush.msra.mxu0 0.0
  %690 = vmatpush.msra.mxu0 0.0
  %691 = vmatpush.msra.mxu0 0.0
  %692 = vmatpush.msra.mxu0 0.0
  %693 = vmatpush.msra.mxu0 %v408
  %694 = vmatpush.msra.mxu0 %v407
  %695 = vmatpush.msra.mxu0 %v406
  %696 = vmatpush.msra.mxu0 %v405
  %697 = vmatmul.f32.gmra.mxu0 %v679
  %v698 = vpop.f32.mrf.mxu0
  %v699 = vadd.f32 %v676, %v698
  %700 = vdwg.mxu0
  %v701 = vmul.f32 %v699, 0.5
  %v702 = vmul.f32 %v699, 0.044715
  %v703 = vmul.f32 %v702, %v699
  %v704 = vmul.f32 %v703, %v699
  %v705 = vadd.f32 %v699, %v704
  %v706 = vmul.f32 %v705, 0.7978846
  %v707 = vtanh.pop %v706
  %v708 = vadd.f32 %v707, 1.0
  %v709 = vmul.f32 %v701, %v708
  %710 = vmatpush.xpose.msra.mxu0 0.0
  %711 = vmatpush.xpose.msra.mxu0 0.0
  %712 = vmatpush.xpose.msra.mxu0 0.0
  %713 = vmatpush.xpose.msra.mxu0 0.0
  %714 = vmatpush.xpose.msra.mxu0 0.0
  %715 = vmatpush.xpose.msra.mxu0 0.0
  %716 = vmatpush.xpose.msra.mxu0 0.0
  %717 = vmatpush.xpose.msra.mxu0 0.0
  %718 = vmatpush.xpose.msra.mxu0 0.0
  %719 = vmatpush.xpose.msra.mxu0 0.0
  %720 = vmatpush.xpose.msra.mxu0 0.0
  %721 = vmatpush.xpose.msra.mxu0 0.0
  %722 = vmatpush.xpose.msra.mxu0 %v412
  %723 = vmatpush.xpose.msra.mxu0 %v411
  %724 = vmatpush.xpose.msra.mxu0 %v410
  %725 = vmatpush.xpose.msra.mxu0 %v409
  %726 = vmatmul.f32.gmra.mxu0 %v709
  %v727 = vpop.f32.mrf.mxu0
  %v728 = vadd.f32 0.0, %v727
  %729 = vdwg.mxu0
  %v730 = vadd.f32 %v644, %v728
  %v732 = vperm.slane %v418, 0
  %v734 = vadd.f32 %v730, %v732
  %v735 = vld [vmem:[%s6] sm:$0x1]
  %v736 = vsel %vm48, %v734, 0.0
  %737 = vadd.xlane.f32.xlu0 %v736
  %v738 = vpop.xlane.xlu0 %737
  %v739 = vmul.f32 %v738, %v58
  %v740 = vsub.f32 %v734, %v739
  %v741 = vmul.f32 %v740, %v740
  %v742 = vsel %vm48, %v741, 0.0
  %743 = vadd.xlane.f32.xlu0 %v742
  %v744 = vpop.xlane.xlu0 %743
  %v745 = vmul.f32 %v744, %v58
  %v746 = vadd.f32 %v745, 1e-05
  %v747 = vrsqrt.pop %v746
  %v748 = vmul.f32 %v747, %v746
  %v749 = vmul.f32 %v748, %v747
  %v750 = vmul.f32 0.5, %v749
  %v751 = vsub.f32 1.5, %v750
  %v752 = vmul.f32 %v747, %v751
  %vm753 = vweird.f32 %v746
  %vm754 = vweird.f32 %v747
  %vm755 = vmor %vm753, %vm754
  %v756 = vsel %vm755, %v747, %v752
  %v757 = vmul.f32 %v740, %v756
  %v759 = vperm.slane %v735, 0
  %v761 = vmul.f32 %v757, %v759
  %762 = vrot.lane.b32.xlu0 %v759, 96
  %v763 = vpop.permute.xlu0 %762
  %v765 = vadd.f32 %v761, %v763
  %v766 = vld [vmem:[%s5] sm:$0xff]
  %v767 = vld [vmem:[%s5 + $0x8] sm:$0xff]
  %v768 = vld [vmem:[%s5 + $0x10] sm:$0xff]
  %v769 = vld [vmem:[%s5 + $0x18] sm:$0xff]
  %770 = vrot.lane.b32.xlu0 %v759, 64
  %v771 = vpop.permute.xlu0 %770
  %v774 = vsel %vm96, %v765, 0
  %776 = vmatpush.msra.mxu0 0.0
  %777 = vmatpush.msra.mxu0 0.0
  %778 = vmatpush.msra.mxu0 0.0
  %779 = vmatpush.msra.mxu0 0.0
  %780 = vmatpush.msra.mxu0 0.0
  %781 = vmatpush.msra.mxu0 0.0
  %782 = vmatpush.msra.mxu0 0.0
  %783 = vmatpush.msra.mxu0 0.0
  %784 = vmatpush.msra.mxu0 0.0
  %785 = vmatpush.msra.mxu0 0.0
  %786 = vmatpush.msra.mxu0 0.0
  %787 = vmatpush.msra.mxu0 0.0
  %788 = vmatpush.msra.mxu0 %v769
  %789 = vmatpush.msra.mxu0 %v768
  %790 = vmatpush.msra.mxu0 %v767
  %791 = vmatpush.msra.mxu0 %v766
  %792 = vmatmul.f32.gmra.mxu0 %v774
  %v793 = vpop.f32.mrf.mxu0
  %v794 = vadd.f32 %v771, %v793
  %795 = vdwg.mxu0
  %796 = vst.msk [vmem:[%s7] sm:$0x3f] %vm48, %v794
  // Predicated region
  $region30: #{mae_forward.4} parent=0 // pred_check
    _
  $region31: #{mae_forward.4} parent=0 // pred_check_branch
    %798 = sbr.rel (0) target = $region33
  $region32: #{mae_forward.4} parent=0 // pred_region
    _
  $region33: #{mae_forward.4} parent=0 // pred_fallthru
    _
  // Predicated region
  $region34: #{mae_forward.4} parent=0 // pred_check
    _
  $region35: #{mae_forward.4} parent=0 // pred_check_branch
    %800 = sbr.rel (0) target = $region37
  $region36: #{mae_forward.4} parent=0 // pred_region
    _
  $region37: #{mae_forward.4} parent=0 // pred_fallthru
    _

// kernel: mae_forward.5
$region0: #{mae_forward.5}
  #allocation0 [shape = 'u32[]', space=smem, size = 0x4, offset = 0x4, fixed_abs, tag = 'smem constant byte address 0x4 - core index']
  #allocation1 [shape = 'u32[72,128]{1,0:T(1,128)}', space=vmem, size = 0x9000, scoped, tag = 'internal scratch']
  %s0 = inlined_call_operand.vmem [shape: f32[18,32], index: 0, kind: input, shape index: {}]
  %s1 = inlined_call_operand.vmem [shape: f32[18,72], index: 1, kind: input, shape index: {}]
  %s2 = inlined_call_operand.vmem [shape: f32[72,32], index: 2, kind: input, shape index: {}]
  %s3 = inlined_call_operand.vmem [shape: f32[1,32,384], index: 3, kind: input, shape index: {}]
  %s4 = inlined_call_operand.vmem [shape: f32[1,1,416], index: 4, kind: input, shape index: {}]
  %s5 = inlined_call_operand.vmem [shape: f32[32,384], index: 5, kind: input, shape index: {}]
  %s6 = inlined_call_operand.vmem [shape: f32[1,448], index: 6, kind: input, shape index: {}]
  %s7 = inlined_call_operand.vmem [shape: f32[18,384], index: 7, kind: output, shape index: {}]
  %s8 = sld [smem:[#allocation0]]
  $region38: #{mae_forward.5} parent=0
    _
  %s10 = ssub.s32 1, %s8
  %s11 = scalar_select 0, %s10, %s8
  // Predicated region
  $region2: #{mae_forward.5} parent=0 // pred_check
    _
  $region3: #{mae_forward.5} parent=0 // pred_check_branch
    %13 = sbr.rel (0) target = $region5
  $region4: #{mae_forward.5} parent=0 // pred_region
    _
  $region5: #{mae_forward.5} parent=0 // pred_fallthru
    _
  // Predicated region
  $region6: #{mae_forward.5} parent=0 // pred_check
    _
  $region7: #{mae_forward.5} parent=0 // pred_check_branch
    %15 = sbr.rel (0) target = $region9
  $region8: #{mae_forward.5} parent=0 // pred_region
    _
  $region9: #{mae_forward.5} parent=0 // pred_fallthru
    _
  // Predicated region
  $region10: #{mae_forward.5} parent=0 // pred_check
    _
  $region11: #{mae_forward.5} parent=0 // pred_check_branch
    %17 = sbr.rel (0) target = $region13
  $region12: #{mae_forward.5} parent=0 // pred_region
    _
  $region13: #{mae_forward.5} parent=0 // pred_fallthru
    _
  // Predicated region
  $region14: #{mae_forward.5} parent=0 // pred_check
    _
  $region15: #{mae_forward.5} parent=0 // pred_check_branch
    %19 = sbr.rel (0) target = $region17
  $region16: #{mae_forward.5} parent=0 // pred_region
    _
  $region17: #{mae_forward.5} parent=0 // pred_fallthru
    _
  // Predicated region
  $region18: #{mae_forward.5} parent=0 // pred_check
    _
  $region19: #{mae_forward.5} parent=0 // pred_check_branch
    %21 = sbr.rel (0) target = $region21
  $region20: #{mae_forward.5} parent=0 // pred_region
    _
  $region21: #{mae_forward.5} parent=0 // pred_fallthru
    _
  // Predicated region
  $region22: #{mae_forward.5} parent=0 // pred_check
    _
  $region23: #{mae_forward.5} parent=0 // pred_check_branch
    %23 = sbr.rel (0) target = $region25
  $region24: #{mae_forward.5} parent=0 // pred_region
    _
  $region25: #{mae_forward.5} parent=0 // pred_fallthru
    _
  // Predicated region
  $region26: #{mae_forward.5} parent=0 // pred_check
    _
  $region27: #{mae_forward.5} parent=0 // pred_check_branch
    %25 = sbr.rel (0) target = $region29
  $region28: #{mae_forward.5} parent=0 // pred_region
    _
  $region29: #{mae_forward.5} parent=0 // pred_fallthru
    _
  %v26 = vld [vmem:[%s0] sm:$0xff]
  %v27 = vld [vmem:[%s0 + $0x8] sm:$0xff]
  %v28 = vld [vmem:[%s0 + $0x10] sm:$0x3]
  %v29 = vld [vmem:[%s1] sm:$0xff]
  %v30 = vld [vmem:[%s1 + $0x8] sm:$0xff]
  %v31 = vld [vmem:[%s1 + $0x10] sm:$0x3]
  %v32 = vld [vmem:[%s2] sm:$0xff]
  %v33 = vld [vmem:[%s2 + $0x8] sm:$0xff]
  %v34 = vld [vmem:[%s2 + $0x10] sm:$0xff]
  %v35 = vld [vmem:[%s2 + $0x18] sm:$0xff]
  %v36 = vld [vmem:[%s2 + $0x20] sm:$0xff]
  %v37 = vld [vmem:[%s2 + $0x28] sm:$0xff]
  %v38 = vld [vmem:[%s2 + $0x30] sm:$0xff]
  %v39 = vld [vmem:[%s2 + $0x38] sm:$0xff]
  %v40 = vld [vmem:[%s2 + $0x40] sm:$0xff]
  %v41 = vld [vmem:[%s3] sm:$0xff]
  %v42 = vld [vmem:[%s3 + $0x18] sm:$0xff]
  %v43 = vld [vmem:[%s3 + $0x30] sm:$0xff]
  %v44 = vld [vmem:[%s3 + $0x48] sm:$0xff]
  %v45 = vld [vmem:[%s3 + $0x8] sm:$0xff]
  %v46 = vld [vmem:[%s3 + $0x20] sm:$0xff]
  %v47 = vld [vmem:[%s3 + $0x38] sm:$0xff]
  %v48 = vld [vmem:[%s3 + $0x50] sm:$0xff]
  %v49 = vld [vmem:[%s3 + $0x10] sm:$0xff]
  %v50 = vld [vmem:[%s3 + $0x28] sm:$0xff]
  %v51 = vld [vmem:[%s3 + $0x40] sm:$0xff]
  %v52 = vld [vmem:[%s3 + $0x58] sm:$0xff]
  %v53 = vld [vmem:[%s4] sm:$0x1]
  %v54 = vld [vmem:[%s4] sm:$0x3]
  %v55 = vld [vmem:[%s4 + $0x1] sm:$0x1]
  %v56 = vld [vmem:[%s4 + $0x2] sm:$0x1]
  %v57 = vld [vmem:[%s4 + $0x3] sm:$0x1]
  %vm58 = vcmask 261120
  %v59 = vsel %vm58, %v26, 0.0
  %60 = vadd.xlane.f32.xlu0 %v59
  %v61 = vpop.xlane.xlu0 %60
  %v62 = vsel %vm58, %v27, 0.0
  %63 = vadd.xlane.f32.xlu0 %v62
  %v64 = vpop.xlane.xlu0 %63
  %vm65 = vcmask 254976
  %v66 = vsel %vm65, %v28, 0.0
  %67 = vadd.xlane.f32.xlu0 %v66
  %v68 = vpop.xlane.xlu0 %67
  %v69 = vrcp.pop 32.0
  %v70 = vmul.f32 32.0, %v69
  %v71 = vsub.f32 1.0, %v70
  %v72 = vmul.f32 %v69, %v71
  %v73 = vadd.f32 %v69, %v72
  %vm74 = vweird.f32 %v69
  %v75 = vsel %vm74, %v69, %v73
  %v76 = vmul.f32 %v61, %v75
  %v77 = vmul.f32 %v64, %v75
  %v78 = vmul.f32 %v68, %v75
  %v79 = vsub.f32 %v26, %v76
  %v80 = vsub.f32 %v27, %v77
  %v81 = vsub.f32 %v28, %v78
  %v82 = vmul.f32 %v79, %v79
  %v83 = vmul.f32 %v80, %v80
  %v84 = vmul.f32 %v81, %v81
  %v85 = vsel %vm58, %v82, 0.0
  %86 = vadd.xlane.f32.xlu0 %v85
  %v87 = vpop.xlane.xlu0 %86
  %v88 = vsel %vm58, %v83, 0.0
  %89 = vadd.xlane.f32.xlu0 %v88
  %v90 = vpop.xlane.xlu0 %89
  %v91 = vsel %vm65, %v84, 0.0
  %92 = vadd.xlane.f32.xlu0 %v91
  %v93 = vpop.xlane.xlu0 %92
  %v94 = vmul.f32 %v87, %v75
  %v95 = vmul.f32 %v90, %v75
  %v96 = vmul.f32 %v93, %v75
  %v97 = vadd.f32 %v94, 1e-05
  %v98 = vadd.f32 %v95, 1e-05
  %v99 = vadd.f32 %v96, 1e-05
  %v100 = vrsqrt.pop %v97
  %v101 = vmul.f32 %v100, %v97
  %v102 = vmul.f32 %v101, %v100
  %v103 = vmul.f32 0.5, %v102
  %v104 = vsub.f32 1.5, %v103
  %v105 = vmul.f32 %v100, %v104
  %vm106 = vweird.f32 %v97
  %vm107 = vweird.f32 %v100
  %vm108 = vmor %vm106, %vm107
  %v109 = vsel %vm108, %v100, %v105
  %v110 = vrsqrt.pop %v98
  %v111 = vmul.f32 %v110, %v98
  %v112 = vmul.f32 %v111, %v110
  %v113 = vmul.f32 0.5, %v112
  %v114 = vsub.f32 1.5, %v113
  %v115 = vmul.f32 %v110, %v114
  %vm116 = vweird.f32 %v98
  %vm117 = vweird.f32 %v110
  %vm118 = vmor %vm116, %vm117
  %v119 = vsel %vm118, %v110, %v115
  %v120 = vrsqrt.pop %v99
  %v121 = vmul.f32 %v120, %v99
  %v122 = vmul.f32 %v121, %v120
  %v123 = vmul.f32 0.5, %v122
  %v124 = vsub.f32 1.5, %v123
  %v125 = vmul.f32 %v120, %v124
  %vm126 = vweird.f32 %v99
  %vm127 = vweird.f32 %v120
  %vm128 = vmor %vm126, %vm127
  %v129 = vsel %vm128, %v120, %v125
  %v130 = vmul.f32 %v79, %v109
  %v131 = vmul.f32 %v80, %v119
  %v132 = vmul.f32 %v81, %v129
  %v134 = vperm.slane %v53, 0
  %v136 = vmul.f32 %v130, %v134
  %v137 = vmul.f32 %v131, %v134
  %v138 = vmul.f32 %v132, %v134
  %139 = vrot.lane.b32.xlu0 %v134, 96
  %v140 = vpop.permute.xlu0 %139
  %v142 = vadd.f32 %v136, %v140
  %v143 = vadd.f32 %v137, %v140
  %v144 = vadd.f32 %v138, %v140
  %v146 = vperm.slane %v54, 0
  %v147 = vperm.slane %v54, 1
  %148 = vrot.lane.b32.xlu0 %v146, 64
  %v149 = vpop.permute.xlu0 %148
  %150 = vrot.lane.b32.xlu0 %v147, 64
  %v151 = vpop.permute.xlu0 %150
  %vm152 = vcmask 523264
  %v153 = vsel %vm152, %v149, %v151
  %v156 = vsel %vm58, %v142, 0
  %v159 = vsel %vm58, %v143, 0
  %v162 = vsel %vm58, %v144, 0
  %164 = vmatpush.msra.mxu0 0.0
  %165 = vmatpush.msra.mxu0 0.0
  %166 = vmatpush.msra.mxu0 0.0
  %167 = vmatpush.msra.mxu0 0.0
  %168 = vmatpush.msra.mxu0 0.0
  %169 = vmatpush.msra.mxu0 0.0
  %170 = vmatpush.msra.mxu0 0.0
  %171 = vmatpush.msra.mxu0 0.0
  %172 = vmatpush.msra.mxu0 0.0
  %173 = vmatpush.msra.mxu0 0.0
  %174 = vmatpush.msra.mxu0 0.0
  %175 = vmatpush.msra.mxu0 0.0
  %176 = vmatpush.msra.mxu0 %v44
  %177 = vmatpush.msra.mxu0 %v43
  %178 = vmatpush.msra.mxu0 %v42
  %179 = vmatpush.msra.mxu0 %v41
  %180 = vmatmul.f32.gmra.mxu0 %v156
  %v181 = vpop.f32.mrf.mxu0
  %v182 = vadd.f32 %v153, %v181
  %183 = vmatmul.f32.gmra.mxu0 %v159
  %v184 = vpop.f32.mrf.mxu0
  %v185 = vadd.f32 %v153, %v184
  %186 = vmatmul.f32.gmra.mxu0 %v162
  %v187 = vpop.f32.mrf.mxu0
  %v188 = vadd.f32 %v153, %v187
  %189 = vdwg.mxu0
  %vm193 = vcmask 1041408
  %v194 = vrot.slane %v182, 6
  %v195 = vrot.slane %v185, 6
  %v196 = vsel %vm193, %v194, %v195
  %v197 = vrot.slane %v188, 6
  %v198 = vsel %vm193, %v195, %v197
  %vm202 = vcmask 1043456
  %v203 = vrot.slane %v182, 4
  %v204 = vrot.slane %v185, 4
  %v205 = vsel %vm202, %v203, %v204
  %v206 = vrot.slane %v188, 4
  %v207 = vsel %vm202, %v204, %v206
  %vm211 = vcmask 1045504
  %v212 = vrot.slane %v182, 2
  %v213 = vrot.slane %v185, 2
  %v214 = vsel %vm211, %v212, %v213
  %v215 = vrot.slane %v188, 2
  %v216 = vsel %vm211, %v213, %v215
  %v220 = vsel %vm193, %v188, %v194
  %v221 = vsel %vm202, %v198, %v203
  %v222 = vsel %vm211, %v207, %v212
  %232 = vrot.lane.b32.xlu0 %v32, 32
  %v233 = vpop.permute.xlu0 %232
  %234 = vrot.lane.b32.xlu0 %v33, 32
  %v235 = vpop.permute.xlu0 %234
  %236 = vrot.lane.b32.xlu0 %v34, 32
  %v237 = vpop.permute.xlu0 %236
  %238 = vrot.lane.b32.xlu0 %v35, 32
  %v239 = vpop.permute.xlu0 %238
  %240 = vrot.lane.b32.xlu0 %v36, 32
  %v241 = vpop.permute.xlu0 %240
  %242 = vrot.lane.b32.xlu0 %v37, 32
  %v243 = vpop.permute.xlu0 %242
  %244 = vrot.lane.b32.xlu0 %v38, 32
  %v245 = vpop.permute.xlu0 %244
  %246 = vrot.lane.b32.xlu0 %v39, 32
  %v247 = vpop.permute.xlu0 %246
  %248 = vrot.lane.b32.xlu0 %v40, 32
  %v249 = vpop.permute.xlu0 %248
  %v259 = vmul.f32 %v182, %v233
  %v260 = vmul.f32 %v185, %v235
  %v261 = vmul.f32 %v220, %v237
  %v262 = vmul.f32 %v196, %v239
  %v263 = vmul.f32 %v221, %v241
  %v264 = vmul.f32 %v205, %v243
  %v265 = vmul.f32 %v222, %v245
  %v266 = vmul.f32 %v214, %v247
  %v267 = vmul.f32 %v216, %v249
  %268 = vrot.lane.b32.xlu0 %v32, 64
  %v269 = vpop.permute.xlu0 %268
  %270 = vrot.lane.b32.xlu0 %v33, 64
  %v271 = vpop.permute.xlu0 %270
  %272 = vrot.lane.b32.xlu0 %v34, 64
  %v273 = vpop.permute.xlu0 %272
  %274 = vrot.lane.b32.xlu0 %v35, 64
  %v275 = vpop.permute.xlu0 %274
  %276 = vrot.lane.b32.xlu0 %v36, 64
  %v277 = vpop.permute.xlu0 %276
  %278 = vrot.lane.b32.xlu0 %v37, 64
  %v279 = vpop.permute.xlu0 %278
  %280 = vrot.lane.b32.xlu0 %v38, 64
  %v281 = vpop.permute.xlu0 %280
  %282 = vrot.lane.b32.xlu0 %v39, 64
  %v283 = vpop.permute.xlu0 %282
  %284 = vrot.lane.b32.xlu0 %v40, 64
  %v285 = vpop.permute.xlu0 %284
  %v295 = vmul.f32 %v182, %v269
  %v296 = vmul.f32 %v185, %v271
  %v297 = vmul.f32 %v220, %v273
  %v298 = vmul.f32 %v196, %v275
  %v299 = vmul.f32 %v221, %v277
  %v300 = vmul.f32 %v205, %v279
  %v301 = vmul.f32 %v222, %v281
  %v302 = vmul.f32 %v214, %v283
  %v303 = vmul.f32 %v216, %v285
  %313 = vrot.lane.b32.xlu0 %v259, 96
  %v314 = vpop.permute.xlu0 %313
  %315 = vrot.lane.b32.xlu0 %v260, 96
  %v316 = vpop.permute.xlu0 %315
  %317 = vrot.lane.b32.xlu0 %v261, 96
  %v318 = vpop.permute.xlu0 %317
  %319 = vrot.lane.b32.xlu0 %v262, 96
  %v320 = vpop.permute.xlu0 %319
  %321 = vrot.lane.b32.xlu0 %v263, 96
  %v322 = vpop.permute.xlu0 %321
  %323 = vrot.lane.b32.xlu0 %v264, 96
  %v324 = vpop.permute.xlu0 %323
  %325 = vrot.lane.b32.xlu0 %v265, 96
  %v326 = vpop.permute.xlu0 %325
  %327 = vrot.lane.b32.xlu0 %v266, 96
  %v328 = vpop.permute.xlu0 %327
  %329 = vrot.lane.b32.xlu0 %v267, 96
  %v330 = vpop.permute.xlu0 %329
  %v331 = vsel %vm58, %v182, 0
  %v333 = vsel %vm58, %v185, 0
  %v335 = vsel %vm58, %v188, 0
  %v337 = vsel %vm58, %v314, 0
  %v339 = vsel %vm58, %v316, 0
  %v341 = vsel %vm58, %v318, 0
  %v343 = vsel %vm58, %v320, 0
  %v345 = vsel %vm58, %v322, 0
  %v347 = vsel %vm58, %v324, 0
  %v349 = vsel %vm58, %v326, 0
  %v351 = vsel %vm58, %v328, 0
  %v353 = vsel %vm58, %v330, 0
  %355 = vmatpush.xpose.msra.mxu0 0.0
  %356 = vmatpush.xpose.msra.mxu0 0.0
  %357 = vmatpush.xpose.msra.mxu0 0.0
  %358 = vmatpush.xpose.msra.mxu0 0.0
  %359 = vmatpush.xpose.msra.mxu0 0.0
  %360 = vmatpush.xpose.msra.mxu0 0.0
  %361 = vmatpush.xpose.msra.mxu0 0.0
  %362 = vmatpush.xpose.msra.mxu0 %v353
  %363 = vmatpush.xpose.msra.mxu0 %v351
  %364 = vmatpush.xpose.msra.mxu0 %v349
  %365 = vmatpush.xpose.msra.mxu0 %v347
  %366 = vmatpush.xpose.msra.mxu0 %v345
  %367 = vmatpush.xpose.msra.mxu0 %v343
  %368 = vmatpush.xpose.msra.mxu0 %v341
  %369 = vmatpush.xpose.msra.mxu0 %v339
  %370 = vmatpush.xpose.msra.mxu0 %v337
  %371 = vmatmul.f32.gmra.mxu0 %v331
  %v372 = vpop.f32.mrf.mxu0
  %v373 = vadd.f32 0.0, %v372
  %374 = vmatmul.f32.gmra.mxu0 %v333
  %v375 = vpop.f32.mrf.mxu0
  %v376 = vadd.f32 0.0, %v375
  %377 = vmatmul.f32.gmra.mxu0 %v335
  %v378 = vpop.f32.mrf.mxu0
  %v379 = vadd.f32 0.0, %v378
  %380 = vdwg.mxu0
  %v381 = vmul.f32 %v373, 0.35355338
  %v382 = vmul.f32 %v376, 0.35355338
  %v383 = vmul.f32 %v379, 0.35355338
  %v384 = vadd.f32 %v381, %v29
  %v385 = vadd.f32 %v382, %v30
  %v386 = vadd.f32 %v383, %v31
  %vm387 = vcmask 588800
  %v388 = vsel %vm387, %v384, -inf
  %389 = vmax.xlane.f32.xlu0 %v388
  %v390 = vpop.xlane.xlu0 %389
  %v391 = vsel %vm387, %v385, -inf
  %392 = vmax.xlane.f32.xlu0 %v391
  %v393 = vpop.xlane.xlu0 %392
  %vm394 = vcmask 582656
  %v395 = vsel %vm394, %v386, -inf
  %396 = vmax.xlane.f32.xlu0 %v395
  %v397 = vpop.xlane.xlu0 %396
  %v398 = vsub.f32 %v384, %v390
  %v399 = vsub.f32 %v385, %v393
  %v400 = vsub.f32 %v386, %v397
  %v401 = vmul.f32 %v398, 1.442695
  %v402 = vpow.pop %v401
  %v403 = vmul.f32 %v399, 1.442695
  %v404 = vpow.pop %v403
  %v405 = vmul.f32 %v400, 1.442695
  %v406 = vpow.pop %v405
  %416 = vrot.lane.b32.xlu0 %v295, 64
  %v417 = vpop.permute.xlu0 %416
  %418 = vrot.lane.b32.xlu0 %v296, 64
  %v419 = vpop.permute.xlu0 %418
  %420 = vrot.lane.b32.xlu0 %v297, 64
  %v421 = vpop.permute.xlu0 %420
  %422 = vrot.lane.b32.xlu0 %v298, 64
  %v423 = vpop.permute.xlu0 %422
  %424 = vrot.lane.b32.xlu0 %v299, 64
  %v425 = vpop.permute.xlu0 %424
  %426 = vrot.lane.b32.xlu0 %v300, 64
  %v427 = vpop.permute.xlu0 %426
  %428 = vrot.lane.b32.xlu0 %v301, 64
  %v429 = vpop.permute.xlu0 %428
  %430 = vrot.lane.b32.xlu0 %v302, 64
  %v431 = vpop.permute.xlu0 %430
  %432 = vrot.lane.b32.xlu0 %v303, 64
  %v433 = vpop.permute.xlu0 %432
  %v444 = vsel %vm387, %v402, 0
  %v447 = vsel %vm387, %v404, 0
  %v450 = vsel %vm387, %v406, 0
  %452 = vmatpush.msra.mxu0 0.0
  %453 = vmatpush.msra.mxu0 0.0
  %454 = vmatpush.msra.mxu0 0.0
  %455 = vmatpush.msra.mxu0 0.0
  %456 = vmatpush.msra.mxu0 0.0
  %457 = vmatpush.msra.mxu0 0.0
  %458 = vmatpush.msra.mxu0 0.0
  %459 = vmatpush.msra.mxu0 %v433
  %460 = vmatpush.msra.mxu0 %v431
  %461 = vmatpush.msra.mxu0 %v429
  %462 = vmatpush.msra.mxu0 %v427
  %463 = vmatpush.msra.mxu0 %v425
  %464 = vmatpush.msra.mxu0 %v423
  %465 = vmatpush.msra.mxu0 %v421
  %466 = vmatpush.msra.mxu0 %v419
  %467 = vmatpush.msra.mxu0 %v417
  %468 = vmatmul.f32.gmra.mxu0 %v444
  %v469 = vpop.f32.mrf.mxu0
  %v470 = vadd.f32 0.0, %v469
  %471 = vmatmul.f32.gmra.mxu0 %v447
  %v472 = vpop.f32.mrf.mxu0
  %v473 = vadd.f32 0.0, %v472
  %474 = vmatmul.f32.gmra.mxu0 %v450
  %v475 = vpop.f32.mrf.mxu0
  %v476 = vadd.f32 0.0, %v475
  %477 = vdwg.mxu0
  %478 = vmatpush.msra.mxu0 0.0
  %479 = vmatpush.msra.mxu0 0.0
  %480 = vmatpush.msra.mxu0 0.0
  %481 = vmatpush.msra.mxu0 0.0
  %482 = vmatpush.msra.mxu0 0.0
  %483 = vmatpush.msra.mxu0 0.0
  %484 = vmatpush.msra.mxu0 0.0
  %485 = vmatpush.msra.mxu0 %v40
  %486 = vmatpush.msra.mxu0 %v39
  %487 = vmatpush.msra.mxu0 %v38
  %488 = vmatpush.msra.mxu0 %v37
  %489 = vmatpush.msra.mxu0 %v36
  %490 = vmatpush.msra.mxu0 %v35
  %491 = vmatpush.msra.mxu0 %v34
  %492 = vmatpush.msra.mxu0 %v33
  %493 = vmatpush.msra.mxu0 %v32
  %494 = vmatmul.f32.gmra.mxu0 %v444
  %v495 = vpop.f32.mrf.mxu0
  %v496 = vadd.f32 0.0, %v495
  %497 = vmatmul.f32.gmra.mxu0 %v447
  %v498 = vpop.f32.mrf.mxu0
  %v499 = vadd.f32 0.0, %v498
  %500 = vmatmul.f32.gmra.mxu0 %v450
  %v501 = vpop.f32.mrf.mxu0
  %v502 = vadd.f32 0.0, %v501
  %503 = vdwg.mxu0
  %v504 = vrcp.pop %v496
  %v505 = vrcp.pop %v499
  %v506 = vrcp.pop %v502
  %v507 = vmul.f32 %v470, %v504
  %v508 = vmul.f32 %v473, %v505
  %v509 = vmul.f32 %v476, %v506
  %514 = vrot.lane.b32.xlu0 %v41, 32
  %v515 = vpop.permute.xlu0 %514
  %516 = vrot.lane.b32.xlu0 %v42, 32
  %v517 = vpop.permute.xlu0 %516
  %518 = vrot.lane.b32.xlu0 %v43, 32
  %v519 = vpop.permute.xlu0 %518
  %520 = vrot.lane.b32.xlu0 %v44, 32
  %v521 = vpop.permute.xlu0 %520
  %v527 = vsel %vm58, %v507, 0
  %v530 = vsel %vm58, %v508, 0
  %v533 = vsel %vm58, %v509, 0
  %535 = vmatpush.msra.mxu0 0.0
  %536 = vmatpush.msra.mxu0 0.0
  %537 = vmatpush.msra.mxu0 0.0
  %538 = vmatpush.msra.mxu0 0.0
  %539 = vmatpush.msra.mxu0 0.0
  %540 = vmatpush.msra.mxu0 0.0
  %541 = vmatpush.msra.mxu0 0.0
  %542 = vmatpush.msra.mxu0 0.0
  %543 = vmatpush.msra.mxu0 0.0
  %544 = vmatpush.msra.mxu0 0.0
  %545 = vmatpush.msra.mxu0 0.0
  %546 = vmatpush.msra.mxu0 0.0
  %547 = vmatpush.msra.mxu0 %v521
  %548 = vmatpush.msra.mxu0 %v519
  %549 = vmatpush.msra.mxu0 %v517
  %550 = vmatpush.msra.mxu0 %v515
  %551 = vmatmul.f32.gmra.mxu0 %v527
  %v552 = vpop.f32.mrf.mxu0
  %v553 = vadd.f32 0.0, %v552
  %554 = vmatmul.f32.gmra.mxu0 %v530
  %v555 = vpop.f32.mrf.mxu0
  %v556 = vadd.f32 0.0, %v555
  %557 = vmatmul.f32.gmra.mxu0 %v533
  %v558 = vpop.f32.mrf.mxu0
  %v559 = vadd.f32 0.0, %v558
  %560 = vdwg.mxu0
  %v561 = vadd.f32 %v26, %v553
  %v562 = vadd.f32 %v27, %v556
  %v563 = vadd.f32 %v28, %v559
  %v565 = vperm.slane %v55, 0
  %566 = vrot.lane.b32.xlu0 %v565, 96
  %v567 = vpop.permute.xlu0 %566
  %v569 = vadd.f32 %v561, %v567
  %v570 = vadd.f32 %v562, %v567
  %v571 = vadd.f32 %v563, %v567
  %v572 = vsel %vm58, %v569, 0.0
  %573 = vadd.xlane.f32.xlu0 %v572
  %v574 = vpop.xlane.xlu0 %573
  %v575 = vsel %vm58, %v570, 0.0
  %576 = vadd.xlane.f32.xlu0 %v575
  %v577 = vpop.xlane.xlu0 %576
  %v578 = vsel %vm65, %v571, 0.0
  %579 = vadd.xlane.f32.xlu0 %v578
  %v580 = vpop.xlane.xlu0 %579
  %v581 = vmul.f32 %v574, %v75
  %v582 = vmul.f32 %v577, %v75
  %v583 = vmul.f32 %v580, %v75
  %v584 = vsub.f32 %v569, %v581
  %v585 = vsub.f32 %v570, %v582
  %v586 = vsub.f32 %v571, %v583
  %v587 = vmul.f32 %v584, %v584
  %v588 = vmul.f32 %v585, %v585
  %v589 = vmul.f32 %v586, %v586
  %v590 = vsel %vm58, %v587, 0.0
  %591 = vadd.xlane.f32.xlu0 %v590
  %v592 = vpop.xlane.xlu0 %591
  %v593 = vsel %vm58, %v588, 0.0
  %594 = vadd.xlane.f32.xlu0 %v593
  %v595 = vpop.xlane.xlu0 %594
  %v596 = vsel %vm65, %v589, 0.0
  %597 = vadd.xlane.f32.xlu0 %v596
  %v598 = vpop.xlane.xlu0 %597
  %v599 = vmul.f32 %v592, %v75
  %v600 = vmul.f32 %v595, %v75
  %v601 = vmul.f32 %v598, %v75
  %v602 = vadd.f32 %v599, 1e-05
  %v603 = vadd.f32 %v600, 1e-05
  %v604 = vadd.f32 %v601, 1e-05
  %v605 = vrsqrt.pop %v602
  %v606 = vmul.f32 %v605, %v602
  %v607 = vmul.f32 %v606, %v605
  %v608 = vmul.f32 0.5, %v607
  %v609 = vsub.f32 1.5, %v608
  %v610 = vmul.f32 %v605, %v609
  %vm611 = vweird.f32 %v602
  %vm612 = vweird.f32 %v605
  %vm613 = vmor %vm611, %vm612
  %v614 = vsel %vm613, %v605, %v610
  %v615 = vrsqrt.pop %v603
  %v616 = vmul.f32 %v615, %v603
  %v617 = vmul.f32 %v616, %v615
  %v618 = vmul.f32 0.5, %v617
  %v619 = vsub.f32 1.5, %v618
  %v620 = vmul.f32 %v615, %v619
  %vm621 = vweird.f32 %v603
  %vm622 = vweird.f32 %v615
  %vm623 = vmor %vm621, %vm622
  %v624 = vsel %vm623, %v615, %v620
  %v625 = vrsqrt.pop %v604
  %v626 = vmul.f32 %v625, %v604
  %v627 = vmul.f32 %v626, %v625
  %v628 = vmul.f32 0.5, %v627
  %v629 = vsub.f32 1.5, %v628
  %v630 = vmul.f32 %v625, %v629
  %vm631 = vweird.f32 %v604
  %vm632 = vweird.f32 %v625
  %vm633 = vmor %vm631, %vm632
  %v634 = vsel %vm633, %v625, %v630
  %v635 = vmul.f32 %v584, %v614
  %v636 = vmul.f32 %v585, %v624
  %v637 = vmul.f32 %v586, %v634
  %638 = vrot.lane.b32.xlu0 %v565, 64
  %v639 = vpop.permute.xlu0 %638
  %v641 = vmul.f32 %v635, %v639
  %v642 = vmul.f32 %v636, %v639
  %v643 = vmul.f32 %v637, %v639
  %644 = vrot.lane.b32.xlu0 %v565, 32
  %v645 = vpop.permute.xlu0 %644
  %v647 = vadd.f32 %v641, %v645
  %v648 = vadd.f32 %v642, %v645
  %v649 = vadd.f32 %v643, %v645
  %v651 = vperm.slane %v56, 0
  %v654 = vsel %vm58, %v647, 0
  %v657 = vsel %vm58, %v648, 0
  %v660 = vsel %vm58, %v649, 0
  %662 = vmatpush.msra.mxu0 0.0
  %663 = vmatpush.msra.mxu0 0.0
  %664 = vmatpush.msra.mxu0 0.0
  %665 = vmatpush.msra.mxu0 0.0
  %666 = vmatpush.msra.mxu0 0.0
  %667 = vmatpush.msra.mxu0 0.0
  %668 = vmatpush.msra.mxu0 0.0
  %669 = vmatpush.msra.mxu0 0.0
  %670 = vmatpush.msra.mxu0 0.0
  %671 = vmatpush.msra.mxu0 0.0
  %672 = vmatpush.msra.mxu0 0.0
  %673 = vmatpush.msra.mxu0 0.0
  %674 = vmatpush.msra.mxu0 %v48
  %675 = vmatpush.msra.mxu0 %v47
  %676 = vmatpush.msra.mxu0 %v46
  %677 = vmatpush.msra.mxu0 %v45
  %678 = vmatmul.f32.gmra.mxu0 %v654
  %v679 = vpop.f32.mrf.mxu0
  %v680 = vadd.f32 %v651, %v679
  %681 = vmatmul.f32.gmra.mxu0 %v657
  %v682 = vpop.f32.mrf.mxu0
  %v683 = vadd.f32 %v651, %v682
  %684 = vmatmul.f32.gmra.mxu0 %v660
  %v685 = vpop.f32.mrf.mxu0
  %v686 = vadd.f32 %v651, %v685
  %687 = vdwg.mxu0
  %v688 = vmul.f32 %v680, 0.5
  %v689 = vmul.f32 %v683, 0.5
  %v690 = vmul.f32 %v686, 0.5
  %v691 = vmul.f32 %v680, 0.044715
  %v692 = vmul.f32 %v683, 0.044715
  %v693 = vmul.f32 %v686, 0.044715
  %v694 = vmul.f32 %v691, %v680
  %v695 = vmul.f32 %v692, %v683
  %v696 = vmul.f32 %v693, %v686
  %v697 = vmul.f32 %v694, %v680
  %v698 = vmul.f32 %v695, %v683
  %v699 = vmul.f32 %v696, %v686
  %v700 = vadd.f32 %v680, %v697
  %v701 = vadd.f32 %v683, %v698
  %v702 = vadd.f32 %v686, %v699
  %v703 = vmul.f32 %v700, 0.7978846
  %v704 = vmul.f32 %v701, 0.7978846
  %v705 = vmul.f32 %v702, 0.7978846
  %v706 = vtanh.pop %v703
  %v707 = vtanh.pop %v704
  %v708 = vtanh.pop %v705
  %v709 = vadd.f32 %v706, 1.0
  %v710 = vadd.f32 %v707, 1.0
  %v711 = vadd.f32 %v708, 1.0
  %v712 = vmul.f32 %v688, %v709
  %v713 = vmul.f32 %v689, %v710
  %v714 = vmul.f32 %v690, %v711
  %715 = vmatpush.xpose.msra.mxu0 0.0
  %716 = vmatpush.xpose.msra.mxu0 0.0
  %717 = vmatpush.xpose.msra.mxu0 0.0
  %718 = vmatpush.xpose.msra.mxu0 0.0
  %719 = vmatpush.xpose.msra.mxu0 0.0
  %720 = vmatpush.xpose.msra.mxu0 0.0
  %721 = vmatpush.xpose.msra.mxu0 0.0
  %722 = vmatpush.xpose.msra.mxu0 0.0
  %723 = vmatpush.xpose.msra.mxu0 0.0
  %724 = vmatpush.xpose.msra.mxu0 0.0
  %725 = vmatpush.xpose.msra.mxu0 0.0
  %726 = vmatpush.xpose.msra.mxu0 0.0
  %727 = vmatpush.xpose.msra.mxu0 %v52
  %728 = vmatpush.xpose.msra.mxu0 %v51
  %729 = vmatpush.xpose.msra.mxu0 %v50
  %730 = vmatpush.xpose.msra.mxu0 %v49
  %731 = vmatmul.f32.gmra.mxu0 %v712
  %v732 = vpop.f32.mrf.mxu0
  %v733 = vadd.f32 0.0, %v732
  %734 = vmatmul.f32.gmra.mxu0 %v713
  %v735 = vpop.f32.mrf.mxu0
  %v736 = vadd.f32 0.0, %v735
  %737 = vmatmul.f32.gmra.mxu0 %v714
  %v738 = vpop.f32.mrf.mxu0
  %v739 = vadd.f32 0.0, %v738
  %740 = vdwg.mxu0
  %v741 = vadd.f32 %v569, %v733
  %v742 = vadd.f32 %v570, %v736
  %v743 = vadd.f32 %v571, %v739
  %v745 = vperm.slane %v57, 0
  %v747 = vadd.f32 %v741, %v745
  %v748 = vadd.f32 %v742, %v745
  %v749 = vadd.f32 %v743, %v745
  %v750 = vld [vmem:[%s6] sm:$0xf]
  %v751 = vsel %vm58, %v747, 0.0
  %752 = vadd.xlane.f32.xlu0 %v751
  %v753 = vpop.xlane.xlu0 %752
  %v754 = vsel %vm58, %v748, 0.0
  %755 = vadd.xlane.f32.xlu0 %v754
  %v756 = vpop.xlane.xlu0 %755
  %v757 = vsel %vm65, %v749, 0.0
  %758 = vadd.xlane.f32.xlu0 %v757
  %v759 = vpop.xlane.xlu0 %758
  %v760 = vmul.f32 %v753, %v75
  %v761 = vmul.f32 %v756, %v75
  %v762 = vmul.f32 %v759, %v75
  %v763 = vsub.f32 %v747, %v760
  %v764 = vsub.f32 %v748, %v761
  %v765 = vsub.f32 %v749, %v762
  %v766 = vmul.f32 %v763, %v763
  %v767 = vmul.f32 %v764, %v764
  %v768 = vmul.f32 %v765, %v765
  %v769 = vsel %vm58, %v766, 0.0
  %770 = vadd.xlane.f32.xlu0 %v769
  %v771 = vpop.xlane.xlu0 %770
  %v772 = vsel %vm58, %v767, 0.0
  %773 = vadd.xlane.f32.xlu0 %v772
  %v774 = vpop.xlane.xlu0 %773
  %v775 = vsel %vm65, %v768, 0.0
  %776 = vadd.xlane.f32.xlu0 %v775
  %v777 = vpop.xlane.xlu0 %776
  %v778 = vmul.f32 %v771, %v75
  %v779 = vmul.f32 %v774, %v75
  %v780 = vmul.f32 %v777, %v75
  %v781 = vadd.f32 %v778, 1e-05
  %v782 = vadd.f32 %v779, 1e-05
  %v783 = vadd.f32 %v780, 1e-05
  %v784 = vrsqrt.pop %v781
  %v785 = vmul.f32 %v784, %v781
  %v786 = vmul.f32 %v785, %v784
  %v787 = vmul.f32 0.5, %v786
  %v788 = vsub.f32 1.5, %v787
  %v789 = vmul.f32 %v784, %v788
  %vm790 = vweird.f32 %v781
  %vm791 = vweird.f32 %v784
  %vm792 = vmor %vm790, %vm791
  %v793 = vsel %vm792, %v784, %v789
  %v794 = vrsqrt.pop %v782
  %v795 = vmul.f32 %v794, %v782
  %v796 = vmul.f32 %v795, %v794
  %v797 = vmul.f32 0.5, %v796
  %v798 = vsub.f32 1.5, %v797
  %v799 = vmul.f32 %v794, %v798
  %vm800 = vweird.f32 %v782
  %vm801 = vweird.f32 %v794
  %vm802 = vmor %vm800, %vm801
  %v803 = vsel %vm802, %v794, %v799
  %v804 = vrsqrt.pop %v783
  %v805 = vmul.f32 %v804, %v783
  %v806 = vmul.f32 %v805, %v804
  %v807 = vmul.f32 0.5, %v806
  %v808 = vsub.f32 1.5, %v807
  %v809 = vmul.f32 %v804, %v808
  %vm810 = vweird.f32 %v783
  %vm811 = vweird.f32 %v804
  %vm812 = vmor %vm810, %vm811
  %v813 = vsel %vm812, %v804, %v809
  %v814 = vmul.f32 %v763, %v793
  %v815 = vmul.f32 %v764, %v803
  %v816 = vmul.f32 %v765, %v813
  %v818 = vperm.slane %v750, 0
  %v820 = vmul.f32 %v814, %v818
  %v821 = vmul.f32 %v815, %v818
  %v822 = vmul.f32 %v816, %v818
  %823 = vrot.lane.b32.xlu0 %v818, 96
  %v824 = vpop.permute.xlu0 %823
  %v826 = vadd.f32 %v820, %v824
  %v827 = vadd.f32 %v821, %v824
  %v828 = vadd.f32 %v822, %v824
  %v829 = vld [vmem:[%s5] sm:$0xff]
  %v830 = vld [vmem:[%s5 + $0x8] sm:$0xff]
  %v831 = vld [vmem:[%s5 + $0x10] sm:$0xff]
  %v832 = vld [vmem:[%s5 + $0x18] sm:$0xff]
  %v833 = vld [vmem:[%s5 + $0x20] sm:$0xff]
  %v834 = vld [vmem:[%s5 + $0x28] sm:$0xff]
  %v835 = vld [vmem:[%s5 + $0x30] sm:$0xff]
  %v836 = vld [vmem:[%s5 + $0x38] sm:$0xff]
  %v837 = vld [vmem:[%s5 + $0x40] sm:$0xff]
  %v838 = vld [vmem:[%s5 + $0x48] sm:$0xff]
  %v839 = vld [vmem:[%s5 + $0x50] sm:$0xff]
  %v840 = vld [vmem:[%s5 + $0x58] sm:$0xff]
  %v841 = vperm.slane %v750, 1
  %v842 = vperm.slane %v750, 2
  %v843 = vperm.slane %v750, 3
  %844 = vrot.lane.b32.xlu0 %v818, 64
  %v845 = vpop.permute.xlu0 %844
  %846 = vrot.lane.b32.xlu0 %v841, 64
  %v847 = vpop.permute.xlu0 %846
  %848 = vrot.lane.b32.xlu0 %v842, 64
  %v849 = vpop.permute.xlu0 %848
  %850 = vrot.lane.b32.xlu0 %v843, 64
  %v851 = vpop.permute.xlu0 %850
  %v852 = vsel %vm152, %v845, %v847
  %v853 = vsel %vm152, %v847, %v849
  %v854 = vsel %vm152, %v849, %v851
  %v859 = vsel %vm58, %v826, 0
  %v862 = vsel %vm58, %v827, 0
  %v865 = vsel %vm58, %v828, 0
  %867 = vmatpush.msra.mxu0 0.0
  %868 = vmatpush.msra.mxu0 0.0
  %869 = vmatpush.msra.mxu0 0.0
  %870 = vmatpush.msra.mxu0 0.0
  %871 = vmatpush.msra.mxu0 0.0
  %872 = vmatpush.msra.mxu0 0.0
  %873 = vmatpush.msra.mxu0 0.0
  %874 = vmatpush.msra.mxu0 0.0
  %875 = vmatpush.msra.mxu0 0.0
  %876 = vmatpush.msra.mxu0 0.0
  %877 = vmatpush.msra.mxu0 0.0
  %878 = vmatpush.msra.mxu0 0.0
  %879 = vmatpush.msra.mxu0 %v838
  %880 = vmatpush.msra.mxu0 %v835
  %881 = vmatpush.msra.mxu0 %v832
  %882 = vmatpush.msra.mxu0 %v829
  %883 = vmatmul.f32.gmra.mxu0 %v859
  %v884 = vpop.f32.mrf.mxu0
  %v885 = vadd.f32 %v852, %v884
  %886 = vmatmul.f32.gmra.mxu0 %v862
  %v887 = vpop.f32.mrf.mxu0
  %v888 = vadd.f32 %v852, %v887
  %889 = vmatmul.f32.gmra.mxu0 %v865
  %v890 = vpop.f32.mrf.mxu0
  %v891 = vadd.f32 %v852, %v890
  %892 = vdwg.mxu0
  %893 = vmatpush.msra.mxu0 0.0
  %894 = vmatpush.msra.mxu0 0.0
  %895 = vmatpush.msra.mxu0 0.0
  %896 = vmatpush.msra.mxu0 0.0
  %897 = vmatpush.msra.mxu0 0.0
  %898 = vmatpush.msra.mxu0 0.0
  %899 = vmatpush.msra.mxu0 0.0
  %900 = vmatpush.msra.mxu0 0.0
  %901 = vmatpush.msra.mxu0 0.0
  %902 = vmatpush.msra.mxu0 0.0
  %903 = vmatpush.msra.mxu0 0.0
  %904 = vmatpush.msra.mxu0 0.0
  %905 = vmatpush.msra.mxu0 %v839
  %906 = vmatpush.msra.mxu0 %v836
  %907 = vmatpush.msra.mxu0 %v833
  %908 = vmatpush.msra.mxu0 %v830
  %909 = vmatmul.f32.gmra.mxu0 %v859
  %v910 = vpop.f32.mrf.mxu0
  %v911 = vadd.f32 %v853, %v910
  %912 = vmatmul.f32.gmra.mxu0 %v862
  %v913 = vpop.f32.mrf.mxu0
  %v914 = vadd.f32 %v853, %v913
  %915 = vmatmul.f32.gmra.mxu0 %v865
  %v916 = vpop.f32.mrf.mxu0
  %v917 = vadd.f32 %v853, %v916
  %918 = vdwg.mxu0
  %919 = vmatpush.msra.mxu0 0.0
  %920 = vmatpush.msra.mxu0 0.0
  %921 = vmatpush.msra.mxu0 0.0
  %922 = vmatpush.msra.mxu0 0.0
  %923 = vmatpush.msra.mxu0 0.0
  %924 = vmatpush.msra.mxu0 0.0
  %925 = vmatpush.msra.mxu0 0.0
  %926 = vmatpush.msra.mxu0 0.0
  %927 = vmatpush.msra.mxu0 0.0
  %928 = vmatpush.msra.mxu0 0.0
  %929 = vmatpush.msra.mxu0 0.0
  %930 = vmatpush.msra.mxu0 0.0
  %931 = vmatpush.msra.mxu0 %v840
  %932 = vmatpush.msra.mxu0 %v837
  %933 = vmatpush.msra.mxu0 %v834
  %934 = vmatpush.msra.mxu0 %v831
  %935 = vmatmul.f32.gmra.mxu0 %v859
  %v936 = vpop.f32.mrf.mxu0
  %v937 = vadd.f32 %v854, %v936
  %938 = vmatmul.f32.gmra.mxu0 %v862
  %v939 = vpop.f32.mrf.mxu0
  %v940 = vadd.f32 %v854, %v939
  %941 = vmatmul.f32.gmra.mxu0 %v865
  %v942 = vpop.f32.mrf.mxu0
  %v943 = vadd.f32 %v854, %v942
  %944 = vdwg.mxu0
  %945 = vst [vmem:[%s7] sm:$0xff] %v885
  %946 = vst [vmem:[%s7 + $0x8] sm:$0xff] %v911
  %947 = vst [vmem:[%s7 + $0x10] sm:$0xff] %v937
  %948 = vst [vmem:[%s7 + $0x18] sm:$0xff] %v888
  %949 = vst [vmem:[%s7 + $0x20] sm:$0xff] %v914
  %950 = vst [vmem:[%s7 + $0x28] sm:$0xff] %v940
  %951 = vst [vmem:[%s7 + $0x30] sm:$0x3] %v891
  %952 = vst [vmem:[%s7 + $0x38] sm:$0x3] %v917
  %953 = vst [vmem:[%s7 + $0x40] sm:$0x3] %v943
  // Predicated region
  $region30: #{mae_forward.5} parent=0 // pred_check
    _
  $region31: #{mae_forward.5} parent=0 // pred_check_branch
    %955 = sbr.rel (0) target = $region33
  $region32: #{mae_forward.5} parent=0 // pred_region
    _
  $region33: #{mae_forward.5} parent=0 // pred_fallthru
    _
  // Predicated region
  $region34: #{mae_forward.5} parent=0 // pred_check
    _
  $region35: #{mae_forward.5} parent=0 // pred_check_branch
    %957 = sbr.rel (0) target = $region37
  $region36: #{mae_forward.5} parent=0 // pred_region
    _
  $region37: #{mae_forward.5} parent=0 // pred_fallthru
    _

</llo_original>
